<compile_context>
chip_gen: v7x
topology: tpu7x:2x2x1
jax: 0.10.0
libtpu: 0.0.40
codegen_flags: <defaults>
</compile_context>

<pallas_src>
import math

import jax
import jax.numpy as jnp
from jax.experimental import pallas as pl
from jax.experimental.pallas import tpu as pltpu


# ----------------------------------------------------------------------------- kernel
def decode_seq_kernel(x_ref, ctx_ref, h0_ref,
                      we_ref, wattn_ref, wih_ref, whh_ref, wout_ref, bias_ref,
                      out_ref, h_scratch):
    f32 = jnp.float32
    TB, _ = x_ref.shape                 # T*Bp rows (time-major, batch padded to 8)
    Bp, H = ctx_ref.shape
    T = TB // Bp
    Dout = wout_ref.shape[1]

    # -------- unpack fused bias block (loaded once) ---------------------------------
    biases = bias_ref[...]              # (4, 3H)
    b_attn = biases[0:1, :H]            # b_embed @ W_ax + b_attn            (1, H)
    b_i    = biases[1:2, :]             # [b_ih_r+b_hh_r, b_ih_z+b_hh_z, b_ih_n] (1, 3H)
    b_h    = biases[2:3, :]             # [0, 0, b_hh_n]                     (1, 3H)
    b_out  = biases[3:4, :Dout]         # (1, Dout)

    wattn = wattn_ref[...]              # (2H, H): rows [:H] -> emb path, [H:] -> ctx
    w_ax = wattn[:H, :]
    w_ac = wattn[H:, :]

    # -------- batched prologue (independent of the recurrent state) -----------------
    emb = jnp.dot(x_ref[...], we_ref[...], preferred_element_type=f32)       # (T*Bp, H)
    u_x = jnp.dot(emb, w_ax, preferred_element_type=f32)                     # (T*Bp, H)
    ctx_term = jnp.dot(ctx_ref[...], w_ac, preferred_element_type=f32) + b_attn  # (Bp, H)
    u = u_x + jnp.tile(ctx_term, (T, 1))                                     # (T*Bp, H)
    g = jnp.dot(u, wih_ref[...], preferred_element_type=f32) + b_i           # (T*Bp, 3H)

    w_hh = whh_ref[...]                 # loop-invariant recurrent weights   (H, 3H)

    # -------- serial GRU recurrence: ONE small matmul + gate math per step ----------
    h = h0_ref[...]                                                          # (Bp, H)
    for t in range(T):                  # T static & small -> static unroll
        lo = t * Bp
        gh = jnp.dot(h, w_hh, preferred_element_type=f32) + b_h              # (Bp, 3H)
        gi = g[lo:lo + Bp, :]                                                # aligned
        r = jax.nn.sigmoid(gi[:, :H] + gh[:, :H])
        z = jax.nn.sigmoid(gi[:, H:2 * H] + gh[:, H:2 * H])
        n = jnp.tanh(gi[:, 2 * H:] + r * gh[:, 2 * H:])
        h = (1.0 - z) * n + z * h
        h_scratch[lo:lo + Bp, :] = h    # free registers; no concat at the end

    # -------- batched output layer: one matmul + tanh + one store -------------------
    y = jnp.tanh(jnp.dot(h_scratch[...], wout_ref[...],
                         preferred_element_type=f32) + b_out)                # (T*Bp, Dout)
    out_ref[...] = y.astype(out_ref.dtype)


# ---------------------------------------------------------------------------- wrapper
def decode_seq_forward(Hi_data, encoder_hidden, context, p):
    """Hi_data: (B, T, dim_seq_in); encoder_hidden: (L, B, H); context: (1, B, H)."""
    B, T, Din = Hi_data.shape
    H = p["W_embed"].shape[1]
    Dout = p["W_out"].shape[1]
    H3 = 3 * H

    # Sublane-pad the batch so per-step slices / stores are vreg-aligned.
    Bp = -(-B // 8) * 8
    pad_b = Bp - B

    x_tm = jnp.transpose(Hi_data, (1, 0, 2))                        # (T, B, Din)
    x_flat = jnp.pad(x_tm, ((0, 0), (0, pad_b), (0, 0))).reshape(T * Bp, Din)
    h0 = jnp.pad(jnp.sum(encoder_hidden[2:], axis=0), ((0, pad_b), (0, 0)))   # (Bp, H)
    ctx = jnp.pad(context[0], ((0, pad_b), (0, 0)))                           # (Bp, H)

    # Bias folding (algebraically exact):
    #   b_attn_fold = b_embed @ W_attn[:H] + b_attn
    #   b_i_fold    = [b_ih_r + b_hh_r, b_ih_z + b_hh_z, b_ih_n]
    #   b_h_fold    = [0, 0, b_hh_n]        (stays inside r * (.))
    b_attn_fold = p["b_embed"] @ p["W_attn"][:H] + p["b_attn"]
    b_i_fold = jnp.concatenate(
        [p["b_ih"][:, :2 * H] + p["b_hh"][:, :2 * H], p["b_ih"][:, 2 * H:]], axis=1)
    b_h_fold = jnp.concatenate(
        [jnp.zeros((1, 2 * H), jnp.float32), p["b_hh"][:, 2 * H:]], axis=1)

    pad_row = lambda v: jnp.pad(v, ((0, 0), (0, H3 - v.shape[1])))
    bias_pack = jnp.concatenate(
        [pad_row(b_attn_fold), b_i_fold, b_h_fold, pad_row(p["b_out"])], axis=0)  # (4, 3H)

    out_flat = pl.pallas_call(
        decode_seq_kernel,
        out_shape=jax.ShapeDtypeStruct((T * Bp, Dout), jnp.float32),
        scratch_shapes=[pltpu.VMEM((T * Bp, H), jnp.float32)],
    )(x_flat, ctx, h0,
      p["W_embed"], p["W_attn"], p["W_ih"], p["W_hh"], p["W_out"], bias_pack)

    out = out_flat.reshape(T, Bp, Dout)[:, :B, :]                   # strip batch padding
    return jnp.transpose(out, (1, 0, 2))                            # (B, T, dim_out)


# --------------------------------------------------------------------- param creation
def init_params(key, dim_seq_in, rnn_out, dim_out):
    H = rnn_out
    ks = jax.random.split(key, 7)

    def xavier(k, fan_in, fan_out):  # stored already transposed: (in, out)
        lim = math.sqrt(6.0 / (fan_in + fan_out))
        return jax.random.uniform(k, (fan_in, fan_out), jnp.float32, -lim, lim)

    s = 1.0 / math.sqrt(H)
    return dict(
        W_embed=xavier(ks[0], dim_seq_in, H),
        b_embed=jnp.full((1, H), 0.01, jnp.float32),
        W_attn=xavier(ks[1], 2 * H, H),
        b_attn=jnp.full((1, H), 0.01, jnp.float32),
        W_ih=jax.random.uniform(ks[2], (H, 3 * H), jnp.float32, -s, s),
        W_hh=jax.random.uniform(ks[3], (H, 3 * H), jnp.float32, -s, s),
        b_ih=jax.random.uniform(ks[4], (1, 3 * H), jnp.float32, -s, s),
        b_hh=jax.random.uniform(ks[5], (1, 3 * H), jnp.float32, -s, s),
        W_out=xavier(ks[6], H, dim_out),
        b_out=jnp.full((1, dim_out), 0.01, jnp.float32),
    )


# ----------------------------------------------------------------- pure-JAX reference
def decode_seq_reference(Hi_data, encoder_hidden, context, p):
    x = jnp.transpose(Hi_data, (1, 0, 2))            # (T, B, Din)
    h = jnp.sum(encoder_hidden[2:], axis=0)          # (B, H)
    H = h.shape[-1]
    emb = x @ p["W_embed"] + p["b_embed"]
    ctx = jnp.broadcast_to(context[0][None], (x.shape[0],) + context[0].shape)
    u = jnp.concatenate([emb, ctx], axis=-1) @ p["W_attn"] + p["b_attn"]
    outs = []
    for t in range(x.shape[0]):
        gi = u[t] @ p["W_ih"] + p["b_ih"]
        gh = h @ p["W_hh"] + p["b_hh"]
        r = jax.nn.sigmoid(gi[:, :H] + gh[:, :H])
        z = jax.nn.sigmoid(gi[:, H:2 * H] + gh[:, H:2 * H])
        n = jnp.tanh(gi[:, 2 * H:] + r * gh[:, 2 * H:])
        h = (1.0 - z) * n + z * h
        outs.append(jnp.tanh(h @ p["W_out"] + p["b_out"]))
    return jnp.transpose(jnp.stack(outs, axis=0), (1, 0, 2))


# --------------------------------------------------------------------------------- main
if __name__ == "__main__":
    dim_seq_in, rnn_out, dim_out = 5, 32, 5
    B, T, L = 2, 8, 4          # L = encoder layers; forward uses encoder_hidden[2:]

    key = jax.random.PRNGKey(0)
    k_p, k_x, k_h, k_c = jax.random.split(key, 4)

    params = init_params(k_p, dim_seq_in, rnn_out, dim_out)
    Hi_data = jax.random.normal(k_x, (B, T, dim_seq_in), jnp.float32)
    encoder_hidden = jax.random.normal(k_h, (L, B, rnn_out), jnp.float32)
    context = jax.random.normal(k_c, (1, B, rnn_out), jnp.float32)

    out = decode_seq_forward(Hi_data, encoder_hidden, context, params)
    out = jax.block_until_ready(out)

    ref = decode_seq_reference(Hi_data, encoder_hidden, context, params)
    assert out.shape == (B, T, dim_out), out.shape
    assert jnp.allclose(out, ref, rtol=2e-3, atol=2e-3), \
        float(jnp.max(jnp.abs(out - ref)))

    print("KERNEL_OK")
</pallas_src>

<mosaic_0001>
module attributes {stable_mosaic.version = 11 : i64} {
  func.func @decode_seq_kernel(%arg0: memref<64x5xf32, #tpu.memory_space<vmem>>, %arg1: memref<8x32xf32, #tpu.memory_space<vmem>>, %arg2: memref<8x32xf32, #tpu.memory_space<vmem>>, %arg3: memref<5x32xf32, #tpu.memory_space<vmem>>, %arg4: memref<64x32xf32, #tpu.memory_space<vmem>>, %arg5: memref<32x96xf32, #tpu.memory_space<vmem>>, %arg6: memref<32x96xf32, #tpu.memory_space<vmem>>, %arg7: memref<32x5xf32, #tpu.memory_space<vmem>>, %arg8: memref<4x96xf32, #tpu.memory_space<vmem>>, %arg9: memref<64x5xf32, #tpu.memory_space<vmem>>, %arg10: memref<64x32xf32, #tpu.memory_space<vmem>>) attributes {dimension_semantics = [], scalar_prefetch = 0 : i64, scratch_operands = 1 : i64, tpu.core_type = #tpu.core_type<tc>} {
    %c0 = arith.constant 0 : index
    %c0_0 = arith.constant 0 : index
    %0 = vector.load %arg8[%c0, %c0_0] : memref<4x96xf32, #tpu.memory_space<vmem>>, vector<4x96xf32>
    %1 = vector.extract_strided_slice %0 {offsets = [0, 0], sizes = [1, 32], strides = [1, 1]} : vector<4x96xf32> to vector<1x32xf32>
    %2 = vector.extract_strided_slice %0 {offsets = [1, 0], sizes = [1, 96], strides = [1, 1]} : vector<4x96xf32> to vector<1x96xf32>
    %3 = vector.extract_strided_slice %0 {offsets = [2, 0], sizes = [1, 96], strides = [1, 1]} : vector<4x96xf32> to vector<1x96xf32>
    %4 = vector.extract_strided_slice %0 {offsets = [3, 0], sizes = [1, 5], strides = [1, 1]} : vector<4x96xf32> to vector<1x5xf32>
    %c0_1 = arith.constant 0 : index
    %c0_2 = arith.constant 0 : index
    %5 = vector.load %arg4[%c0_1, %c0_2] : memref<64x32xf32, #tpu.memory_space<vmem>>, vector<64x32xf32>
    %6 = vector.extract_strided_slice %5 {offsets = [0, 0], sizes = [32, 32], strides = [1, 1]} : vector<64x32xf32> to vector<32x32xf32>
    %7 = vector.extract_strided_slice %5 {offsets = [32, 0], sizes = [32, 32], strides = [1, 1]} : vector<64x32xf32> to vector<32x32xf32>
    %c0_3 = arith.constant 0 : index
    %c0_4 = arith.constant 0 : index
    %8 = vector.load %arg0[%c0_3, %c0_4] : memref<64x5xf32, #tpu.memory_space<vmem>>, vector<64x5xf32>
    %c0_5 = arith.constant 0 : index
    %c0_6 = arith.constant 0 : index
    %9 = vector.load %arg3[%c0_5, %c0_6] : memref<5x32xf32, #tpu.memory_space<vmem>>, vector<5x32xf32>
    %cst = arith.constant dense<0.000000e+00> : vector<64x32xf32>
    %10 = tpu.matmul %8, %9, %cst {dimension_numbers = #tpu.dot_dimension_numbers<[1], [0], [0], [1], [0, 0, 1, 1], [], []>} : vector<64x5xf32>, vector<5x32xf32>, vector<64x32xf32> -> vector<64x32xf32>
    %cst_7 = arith.constant dense<0.000000e+00> : vector<64x32xf32>
    %11 = tpu.matmul %10, %6, %cst_7 {dimension_numbers = #tpu.dot_dimension_numbers<[1], [0], [0], [1], [0, 0, 1, 1], [], []>} : vector<64x32xf32>, vector<32x32xf32>, vector<64x32xf32> -> vector<64x32xf32>
    %c0_8 = arith.constant 0 : index
    %c0_9 = arith.constant 0 : index
    %12 = vector.load %arg1[%c0_8, %c0_9] : memref<8x32xf32, #tpu.memory_space<vmem>>, vector<8x32xf32>
    %cst_10 = arith.constant dense<0.000000e+00> : vector<8x32xf32>
    %13 = tpu.matmul %12, %7, %cst_10 {dimension_numbers = #tpu.dot_dimension_numbers<[1], [0], [0], [1], [0, 0, 1, 1], [], []>} : vector<8x32xf32>, vector<32x32xf32>, vector<8x32xf32> -> vector<8x32xf32>
    %14 = vector.broadcast %1 : vector<1x32xf32> to vector<8x32xf32>
    %15 = arith.addf %13, %14 : vector<8x32xf32>
    %16 = tpu.concatenate %15, %15, %15, %15, %15, %15, %15, %15 in 0 : vector<8x32xf32>, vector<8x32xf32>, vector<8x32xf32>, vector<8x32xf32>, vector<8x32xf32>, vector<8x32xf32>, vector<8x32xf32>, vector<8x32xf32> -> vector<64x32xf32>
    %17 = arith.addf %11, %16 : vector<64x32xf32>
    %c0_11 = arith.constant 0 : index
    %c0_12 = arith.constant 0 : index
    %18 = vector.load %arg5[%c0_11, %c0_12] : memref<32x96xf32, #tpu.memory_space<vmem>>, vector<32x96xf32>
    %cst_13 = arith.constant dense<0.000000e+00> : vector<64x96xf32>
    %19 = tpu.matmul %17, %18, %cst_13 {dimension_numbers = #tpu.dot_dimension_numbers<[1], [0], [0], [1], [0, 0, 1, 1], [], []>} : vector<64x32xf32>, vector<32x96xf32>, vector<64x96xf32> -> vector<64x96xf32>
    %20 = vector.broadcast %2 : vector<1x96xf32> to vector<64x96xf32>
    %21 = arith.addf %19, %20 : vector<64x96xf32>
    %c0_14 = arith.constant 0 : index
    %c0_15 = arith.constant 0 : index
    %22 = vector.load %arg6[%c0_14, %c0_15] : memref<32x96xf32, #tpu.memory_space<vmem>>, vector<32x96xf32>
    %c0_16 = arith.constant 0 : index
    %c0_17 = arith.constant 0 : index
    %23 = vector.load %arg2[%c0_16, %c0_17] : memref<8x32xf32, #tpu.memory_space<vmem>>, vector<8x32xf32>
    %cst_18 = arith.constant dense<0.000000e+00> : vector<8x96xf32>
    %24 = tpu.matmul %23, %22, %cst_18 {dimension_numbers = #tpu.dot_dimension_numbers<[1], [0], [0], [1], [0, 0, 1, 1], [], []>} : vector<8x32xf32>, vector<32x96xf32>, vector<8x96xf32> -> vector<8x96xf32>
    %25 = vector.broadcast %3 : vector<1x96xf32> to vector<8x96xf32>
    %26 = arith.addf %24, %25 : vector<8x96xf32>
    %27 = vector.extract_strided_slice %21 {offsets = [0, 0], sizes = [8, 96], strides = [1, 1]} : vector<64x96xf32> to vector<8x96xf32>
    %28 = vector.extract_strided_slice %27 {offsets = [0, 0], sizes = [8, 32], strides = [1, 1]} : vector<8x96xf32> to vector<8x32xf32>
    %29 = vector.extract_strided_slice %26 {offsets = [0, 0], sizes = [8, 32], strides = [1, 1]} : vector<8x96xf32> to vector<8x32xf32>
    %30 = arith.addf %28, %29 : vector<8x32xf32>
    %31 = arith.negf %30 : vector<8x32xf32>
    %32 = math.exp %31 : vector<8x32xf32>
    %cst_19 = arith.constant 1.000000e+00 : f32
    %33 = vector.broadcast %cst_19 : f32 to vector<8x32xf32>
    %34 = arith.addf %33, %32 : vector<8x32xf32>
    %35 = arith.divf %33, %34 : vector<8x32xf32>
    %36 = vector.extract_strided_slice %27 {offsets = [0, 32], sizes = [8, 32], strides = [1, 1]} : vector<8x96xf32> to vector<8x32xf32>
    %37 = vector.extract_strided_slice %26 {offsets = [0, 32], sizes = [8, 32], strides = [1, 1]} : vector<8x96xf32> to vector<8x32xf32>
    %38 = arith.addf %36, %37 : vector<8x32xf32>
    %39 = arith.negf %38 : vector<8x32xf32>
    %40 = math.exp %39 : vector<8x32xf32>
    %cst_20 = arith.constant 1.000000e+00 : f32
    %41 = vector.broadcast %cst_20 : f32 to vector<8x32xf32>
    %42 = arith.addf %41, %40 : vector<8x32xf32>
    %43 = arith.divf %41, %42 : vector<8x32xf32>
    %44 = vector.extract_strided_slice %27 {offsets = [0, 64], sizes = [8, 32], strides = [1, 1]} : vector<8x96xf32> to vector<8x32xf32>
    %45 = vector.extract_strided_slice %26 {offsets = [0, 64], sizes = [8, 32], strides = [1, 1]} : vector<8x96xf32> to vector<8x32xf32>
    %46 = arith.mulf %35, %45 : vector<8x32xf32>
    %47 = arith.addf %44, %46 : vector<8x32xf32>
    %48 = math.tanh %47 : vector<8x32xf32>
    %cst_21 = arith.constant 1.000000e+00 : f32
    %49 = vector.broadcast %cst_21 : f32 to vector<8x32xf32>
    %50 = arith.subf %49, %43 : vector<8x32xf32>
    %51 = arith.mulf %50, %48 : vector<8x32xf32>
    %52 = arith.mulf %43, %23 : vector<8x32xf32>
    %53 = arith.addf %51, %52 : vector<8x32xf32>
    %c0_22 = arith.constant 0 : index
    %c0_23 = arith.constant 0 : index
    %54 = vector.load %arg10[%c0_22, %c0_23] : memref<64x32xf32, #tpu.memory_space<vmem>>, vector<8x32xf32>
    tpu.vector_store %arg10[%c0_22, %c0_23], %53 {strides = array<i32>} : memref<64x32xf32, #tpu.memory_space<vmem>>, vector<8x32xf32>,
    %cst_24 = arith.constant dense<0.000000e+00> : vector<8x96xf32>
    %55 = tpu.matmul %53, %22, %cst_24 {dimension_numbers = #tpu.dot_dimension_numbers<[1], [0], [0], [1], [0, 0, 1, 1], [], []>} : vector<8x32xf32>, vector<32x96xf32>, vector<8x96xf32> -> vector<8x96xf32>
    %56 = vector.broadcast %3 : vector<1x96xf32> to vector<8x96xf32>
    %57 = arith.addf %55, %56 : vector<8x96xf32>
    %58 = vector.extract_strided_slice %21 {offsets = [8, 0], sizes = [8, 96], strides = [1, 1]} : vector<64x96xf32> to vector<8x96xf32>
    %59 = vector.extract_strided_slice %58 {offsets = [0, 0], sizes = [8, 32], strides = [1, 1]} : vector<8x96xf32> to vector<8x32xf32>
    %60 = vector.extract_strided_slice %57 {offsets = [0, 0], sizes = [8, 32], strides = [1, 1]} : vector<8x96xf32> to vector<8x32xf32>
    %61 = arith.addf %59, %60 : vector<8x32xf32>
    %62 = arith.negf %61 : vector<8x32xf32>
    %63 = math.exp %62 : vector<8x32xf32>
    %cst_25 = arith.constant 1.000000e+00 : f32
    %64 = vector.broadcast %cst_25 : f32 to vector<8x32xf32>
    %65 = arith.addf %64, %63 : vector<8x32xf32>
    %66 = arith.divf %64, %65 : vector<8x32xf32>
    %67 = vector.extract_strided_slice %58 {offsets = [0, 32], sizes = [8, 32], strides = [1, 1]} : vector<8x96xf32> to vector<8x32xf32>
    %68 = vector.extract_strided_slice %57 {offsets = [0, 32], sizes = [8, 32], strides = [1, 1]} : vector<8x96xf32> to vector<8x32xf32>
    %69 = arith.addf %67, %68 : vector<8x32xf32>
    %70 = arith.negf %69 : vector<8x32xf32>
    %71 = math.exp %70 : vector<8x32xf32>
    %cst_26 = arith.constant 1.000000e+00 : f32
    %72 = vector.broadcast %cst_26 : f32 to vector<8x32xf32>
    %73 = arith.addf %72, %71 : vector<8x32xf32>
    %74 = arith.divf %72, %73 : vector<8x32xf32>
    %75 = vector.extract_strided_slice %58 {offsets = [0, 64], sizes = [8, 32], strides = [1, 1]} : vector<8x96xf32> to vector<8x32xf32>
    %76 = vector.extract_strided_slice %57 {offsets = [0, 64], sizes = [8, 32], strides = [1, 1]} : vector<8x96xf32> to vector<8x32xf32>
    %77 = arith.mulf %66, %76 : vector<8x32xf32>
    %78 = arith.addf %75, %77 : vector<8x32xf32>
    %79 = math.tanh %78 : vector<8x32xf32>
    %cst_27 = arith.constant 1.000000e+00 : f32
    %80 = vector.broadcast %cst_27 : f32 to vector<8x32xf32>
    %81 = arith.subf %80, %74 : vector<8x32xf32>
    %82 = arith.mulf %81, %79 : vector<8x32xf32>
    %83 = arith.mulf %74, %53 : vector<8x32xf32>
    %84 = arith.addf %82, %83 : vector<8x32xf32>
    %c8 = arith.constant 8 : index
    %c0_28 = arith.constant 0 : index
    %85 = vector.load %arg10[%c8, %c0_28] : memref<64x32xf32, #tpu.memory_space<vmem>>, vector<8x32xf32>
    tpu.vector_store %arg10[%c8, %c0_28], %84 {strides = array<i32>} : memref<64x32xf32, #tpu.memory_space<vmem>>, vector<8x32xf32>,
    %cst_29 = arith.constant dense<0.000000e+00> : vector<8x96xf32>
    %86 = tpu.matmul %84, %22, %cst_29 {dimension_numbers = #tpu.dot_dimension_numbers<[1], [0], [0], [1], [0, 0, 1, 1], [], []>} : vector<8x32xf32>, vector<32x96xf32>, vector<8x96xf32> -> vector<8x96xf32>
    %87 = vector.broadcast %3 : vector<1x96xf32> to vector<8x96xf32>
    %88 = arith.addf %86, %87 : vector<8x96xf32>
    %89 = vector.extract_strided_slice %21 {offsets = [16, 0], sizes = [8, 96], strides = [1, 1]} : vector<64x96xf32> to vector<8x96xf32>
    %90 = vector.extract_strided_slice %89 {offsets = [0, 0], sizes = [8, 32], strides = [1, 1]} : vector<8x96xf32> to vector<8x32xf32>
    %91 = vector.extract_strided_slice %88 {offsets = [0, 0], sizes = [8, 32], strides = [1, 1]} : vector<8x96xf32> to vector<8x32xf32>
    %92 = arith.addf %90, %91 : vector<8x32xf32>
    %93 = arith.negf %92 : vector<8x32xf32>
    %94 = math.exp %93 : vector<8x32xf32>
    %cst_30 = arith.constant 1.000000e+00 : f32
    %95 = vector.broadcast %cst_30 : f32 to vector<8x32xf32>
    %96 = arith.addf %95, %94 : vector<8x32xf32>
    %97 = arith.divf %95, %96 : vector<8x32xf32>
    %98 = vector.extract_strided_slice %89 {offsets = [0, 32], sizes = [8, 32], strides = [1, 1]} : vector<8x96xf32> to vector<8x32xf32>
    %99 = vector.extract_strided_slice %88 {offsets = [0, 32], sizes = [8, 32], strides = [1, 1]} : vector<8x96xf32> to vector<8x32xf32>
    %100 = arith.addf %98, %99 : vector<8x32xf32>
    %101 = arith.negf %100 : vector<8x32xf32>
    %102 = math.exp %101 : vector<8x32xf32>
    %cst_31 = arith.constant 1.000000e+00 : f32
    %103 = vector.broadcast %cst_31 : f32 to vector<8x32xf32>
    %104 = arith.addf %103, %102 : vector<8x32xf32>
    %105 = arith.divf %103, %104 : vector<8x32xf32>
    %106 = vector.extract_strided_slice %89 {offsets = [0, 64], sizes = [8, 32], strides = [1, 1]} : vector<8x96xf32> to vector<8x32xf32>
    %107 = vector.extract_strided_slice %88 {offsets = [0, 64], sizes = [8, 32], strides = [1, 1]} : vector<8x96xf32> to vector<8x32xf32>
    %108 = arith.mulf %97, %107 : vector<8x32xf32>
    %109 = arith.addf %106, %108 : vector<8x32xf32>
    %110 = math.tanh %109 : vector<8x32xf32>
    %cst_32 = arith.constant 1.000000e+00 : f32
    %111 = vector.broadcast %cst_32 : f32 to vector<8x32xf32>
    %112 = arith.subf %111, %105 : vector<8x32xf32>
    %113 = arith.mulf %112, %110 : vector<8x32xf32>
    %114 = arith.mulf %105, %84 : vector<8x32xf32>
    %115 = arith.addf %113, %114 : vector<8x32xf32>
    %c16 = arith.constant 16 : index
    %c0_33 = arith.constant 0 : index
    %116 = vector.load %arg10[%c16, %c0_33] : memref<64x32xf32, #tpu.memory_space<vmem>>, vector<8x32xf32>
    tpu.vector_store %arg10[%c16, %c0_33], %115 {strides = array<i32>} : memref<64x32xf32, #tpu.memory_space<vmem>>, vector<8x32xf32>,
    %cst_34 = arith.constant dense<0.000000e+00> : vector<8x96xf32>
    %117 = tpu.matmul %115, %22, %cst_34 {dimension_numbers = #tpu.dot_dimension_numbers<[1], [0], [0], [1], [0, 0, 1, 1], [], []>} : vector<8x32xf32>, vector<32x96xf32>, vector<8x96xf32> -> vector<8x96xf32>
    %118 = vector.broadcast %3 : vector<1x96xf32> to vector<8x96xf32>
    %119 = arith.addf %117, %118 : vector<8x96xf32>
    %120 = vector.extract_strided_slice %21 {offsets = [24, 0], sizes = [8, 96], strides = [1, 1]} : vector<64x96xf32> to vector<8x96xf32>
    %121 = vector.extract_strided_slice %120 {offsets = [0, 0], sizes = [8, 32], strides = [1, 1]} : vector<8x96xf32> to vector<8x32xf32>
    %122 = vector.extract_strided_slice %119 {offsets = [0, 0], sizes = [8, 32], strides = [1, 1]} : vector<8x96xf32> to vector<8x32xf32>
    %123 = arith.addf %121, %122 : vector<8x32xf32>
    %124 = arith.negf %123 : vector<8x32xf32>
    %125 = math.exp %124 : vector<8x32xf32>
    %cst_35 = arith.constant 1.000000e+00 : f32
    %126 = vector.broadcast %cst_35 : f32 to vector<8x32xf32>
    %127 = arith.addf %126, %125 : vector<8x32xf32>
    %128 = arith.divf %126, %127 : vector<8x32xf32>
    %129 = vector.extract_strided_slice %120 {offsets = [0, 32], sizes = [8, 32], strides = [1, 1]} : vector<8x96xf32> to vector<8x32xf32>
    %130 = vector.extract_strided_slice %119 {offsets = [0, 32], sizes = [8, 32], strides = [1, 1]} : vector<8x96xf32> to vector<8x32xf32>
    %131 = arith.addf %129, %130 : vector<8x32xf32>
    %132 = arith.negf %131 : vector<8x32xf32>
    %133 = math.exp %132 : vector<8x32xf32>
    %cst_36 = arith.constant 1.000000e+00 : f32
    %134 = vector.broadcast %cst_36 : f32 to vector<8x32xf32>
    %135 = arith.addf %134, %133 : vector<8x32xf32>
    %136 = arith.divf %134, %135 : vector<8x32xf32>
    %137 = vector.extract_strided_slice %120 {offsets = [0, 64], sizes = [8, 32], strides = [1, 1]} : vector<8x96xf32> to vector<8x32xf32>
    %138 = vector.extract_strided_slice %119 {offsets = [0, 64], sizes = [8, 32], strides = [1, 1]} : vector<8x96xf32> to vector<8x32xf32>
    %139 = arith.mulf %128, %138 : vector<8x32xf32>
    %140 = arith.addf %137, %139 : vector<8x32xf32>
    %141 = math.tanh %140 : vector<8x32xf32>
    %cst_37 = arith.constant 1.000000e+00 : f32
    %142 = vector.broadcast %cst_37 : f32 to vector<8x32xf32>
    %143 = arith.subf %142, %136 : vector<8x32xf32>
    %144 = arith.mulf %143, %141 : vector<8x32xf32>
    %145 = arith.mulf %136, %115 : vector<8x32xf32>
    %146 = arith.addf %144, %145 : vector<8x32xf32>
    %c24 = arith.constant 24 : index
    %c0_38 = arith.constant 0 : index
    %147 = vector.load %arg10[%c24, %c0_38] : memref<64x32xf32, #tpu.memory_space<vmem>>, vector<8x32xf32>
    tpu.vector_store %arg10[%c24, %c0_38], %146 {strides = array<i32>} : memref<64x32xf32, #tpu.memory_space<vmem>>, vector<8x32xf32>,
    %cst_39 = arith.constant dense<0.000000e+00> : vector<8x96xf32>
    %148 = tpu.matmul %146, %22, %cst_39 {dimension_numbers = #tpu.dot_dimension_numbers<[1], [0], [0], [1], [0, 0, 1, 1], [], []>} : vector<8x32xf32>, vector<32x96xf32>, vector<8x96xf32> -> vector<8x96xf32>
    %149 = vector.broadcast %3 : vector<1x96xf32> to vector<8x96xf32>
    %150 = arith.addf %148, %149 : vector<8x96xf32>
    %151 = vector.extract_strided_slice %21 {offsets = [32, 0], sizes = [8, 96], strides = [1, 1]} : vector<64x96xf32> to vector<8x96xf32>
    %152 = vector.extract_strided_slice %151 {offsets = [0, 0], sizes = [8, 32], strides = [1, 1]} : vector<8x96xf32> to vector<8x32xf32>
    %153 = vector.extract_strided_slice %150 {offsets = [0, 0], sizes = [8, 32], strides = [1, 1]} : vector<8x96xf32> to vector<8x32xf32>
    %154 = arith.addf %152, %153 : vector<8x32xf32>
    %155 = arith.negf %154 : vector<8x32xf32>
    %156 = math.exp %155 : vector<8x32xf32>
    %cst_40 = arith.constant 1.000000e+00 : f32
    %157 = vector.broadcast %cst_40 : f32 to vector<8x32xf32>
    %158 = arith.addf %157, %156 : vector<8x32xf32>
    %159 = arith.divf %157, %158 : vector<8x32xf32>
    %160 = vector.extract_strided_slice %151 {offsets = [0, 32], sizes = [8, 32], strides = [1, 1]} : vector<8x96xf32> to vector<8x32xf32>
    %161 = vector.extract_strided_slice %150 {offsets = [0, 32], sizes = [8, 32], strides = [1, 1]} : vector<8x96xf32> to vector<8x32xf32>
    %162 = arith.addf %160, %161 : vector<8x32xf32>
    %163 = arith.negf %162 : vector<8x32xf32>
    %164 = math.exp %163 : vector<8x32xf32>
    %cst_41 = arith.constant 1.000000e+00 : f32
    %165 = vector.broadcast %cst_41 : f32 to vector<8x32xf32>
    %166 = arith.addf %165, %164 : vector<8x32xf32>
    %167 = arith.divf %165, %166 : vector<8x32xf32>
    %168 = vector.extract_strided_slice %151 {offsets = [0, 64], sizes = [8, 32], strides = [1, 1]} : vector<8x96xf32> to vector<8x32xf32>
    %169 = vector.extract_strided_slice %150 {offsets = [0, 64], sizes = [8, 32], strides = [1, 1]} : vector<8x96xf32> to vector<8x32xf32>
    %170 = arith.mulf %159, %169 : vector<8x32xf32>
    %171 = arith.addf %168, %170 : vector<8x32xf32>
    %172 = math.tanh %171 : vector<8x32xf32>
    %cst_42 = arith.constant 1.000000e+00 : f32
    %173 = vector.broadcast %cst_42 : f32 to vector<8x32xf32>
    %174 = arith.subf %173, %167 : vector<8x32xf32>
    %175 = arith.mulf %174, %172 : vector<8x32xf32>
    %176 = arith.mulf %167, %146 : vector<8x32xf32>
    %177 = arith.addf %175, %176 : vector<8x32xf32>
    %c32 = arith.constant 32 : index
    %c0_43 = arith.constant 0 : index
    %178 = vector.load %arg10[%c32, %c0_43] : memref<64x32xf32, #tpu.memory_space<vmem>>, vector<8x32xf32>
    tpu.vector_store %arg10[%c32, %c0_43], %177 {strides = array<i32>} : memref<64x32xf32, #tpu.memory_space<vmem>>, vector<8x32xf32>,
    %cst_44 = arith.constant dense<0.000000e+00> : vector<8x96xf32>
    %179 = tpu.matmul %177, %22, %cst_44 {dimension_numbers = #tpu.dot_dimension_numbers<[1], [0], [0], [1], [0, 0, 1, 1], [], []>} : vector<8x32xf32>, vector<32x96xf32>, vector<8x96xf32> -> vector<8x96xf32>
    %180 = vector.broadcast %3 : vector<1x96xf32> to vector<8x96xf32>
    %181 = arith.addf %179, %180 : vector<8x96xf32>
    %182 = vector.extract_strided_slice %21 {offsets = [40, 0], sizes = [8, 96], strides = [1, 1]} : vector<64x96xf32> to vector<8x96xf32>
    %183 = vector.extract_strided_slice %182 {offsets = [0, 0], sizes = [8, 32], strides = [1, 1]} : vector<8x96xf32> to vector<8x32xf32>
    %184 = vector.extract_strided_slice %181 {offsets = [0, 0], sizes = [8, 32], strides = [1, 1]} : vector<8x96xf32> to vector<8x32xf32>
    %185 = arith.addf %183, %184 : vector<8x32xf32>
    %186 = arith.negf %185 : vector<8x32xf32>
    %187 = math.exp %186 : vector<8x32xf32>
    %cst_45 = arith.constant 1.000000e+00 : f32
    %188 = vector.broadcast %cst_45 : f32 to vector<8x32xf32>
    %189 = arith.addf %188, %187 : vector<8x32xf32>
    %190 = arith.divf %188, %189 : vector<8x32xf32>
    %191 = vector.extract_strided_slice %182 {offsets = [0, 32], sizes = [8, 32], strides = [1, 1]} : vector<8x96xf32> to vector<8x32xf32>
    %192 = vector.extract_strided_slice %181 {offsets = [0, 32], sizes = [8, 32], strides = [1, 1]} : vector<8x96xf32> to vector<8x32xf32>
    %193 = arith.addf %191, %192 : vector<8x32xf32>
    %194 = arith.negf %193 : vector<8x32xf32>
    %195 = math.exp %194 : vector<8x32xf32>
    %cst_46 = arith.constant 1.000000e+00 : f32
    %196 = vector.broadcast %cst_46 : f32 to vector<8x32xf32>
    %197 = arith.addf %196, %195 : vector<8x32xf32>
    %198 = arith.divf %196, %197 : vector<8x32xf32>
    %199 = vector.extract_strided_slice %182 {offsets = [0, 64], sizes = [8, 32], strides = [1, 1]} : vector<8x96xf32> to vector<8x32xf32>
    %200 = vector.extract_strided_slice %181 {offsets = [0, 64], sizes = [8, 32], strides = [1, 1]} : vector<8x96xf32> to vector<8x32xf32>
    %201 = arith.mulf %190, %200 : vector<8x32xf32>
    %202 = arith.addf %199, %201 : vector<8x32xf32>
    %203 = math.tanh %202 : vector<8x32xf32>
    %cst_47 = arith.constant 1.000000e+00 : f32
    %204 = vector.broadcast %cst_47 : f32 to vector<8x32xf32>
    %205 = arith.subf %204, %198 : vector<8x32xf32>
    %206 = arith.mulf %205, %203 : vector<8x32xf32>
    %207 = arith.mulf %198, %177 : vector<8x32xf32>
    %208 = arith.addf %206, %207 : vector<8x32xf32>
    %c40 = arith.constant 40 : index
    %c0_48 = arith.constant 0 : index
    %209 = vector.load %arg10[%c40, %c0_48] : memref<64x32xf32, #tpu.memory_space<vmem>>, vector<8x32xf32>
    tpu.vector_store %arg10[%c40, %c0_48], %208 {strides = array<i32>} : memref<64x32xf32, #tpu.memory_space<vmem>>, vector<8x32xf32>,
    %cst_49 = arith.constant dense<0.000000e+00> : vector<8x96xf32>
    %210 = tpu.matmul %208, %22, %cst_49 {dimension_numbers = #tpu.dot_dimension_numbers<[1], [0], [0], [1], [0, 0, 1, 1], [], []>} : vector<8x32xf32>, vector<32x96xf32>, vector<8x96xf32> -> vector<8x96xf32>
    %211 = vector.broadcast %3 : vector<1x96xf32> to vector<8x96xf32>
    %212 = arith.addf %210, %211 : vector<8x96xf32>
    %213 = vector.extract_strided_slice %21 {offsets = [48, 0], sizes = [8, 96], strides = [1, 1]} : vector<64x96xf32> to vector<8x96xf32>
    %214 = vector.extract_strided_slice %213 {offsets = [0, 0], sizes = [8, 32], strides = [1, 1]} : vector<8x96xf32> to vector<8x32xf32>
    %215 = vector.extract_strided_slice %212 {offsets = [0, 0], sizes = [8, 32], strides = [1, 1]} : vector<8x96xf32> to vector<8x32xf32>
    %216 = arith.addf %214, %215 : vector<8x32xf32>
    %217 = arith.negf %216 : vector<8x32xf32>
    %218 = math.exp %217 : vector<8x32xf32>
    %cst_50 = arith.constant 1.000000e+00 : f32
    %219 = vector.broadcast %cst_50 : f32 to vector<8x32xf32>
    %220 = arith.addf %219, %218 : vector<8x32xf32>
    %221 = arith.divf %219, %220 : vector<8x32xf32>
    %222 = vector.extract_strided_slice %213 {offsets = [0, 32], sizes = [8, 32], strides = [1, 1]} : vector<8x96xf32> to vector<8x32xf32>
    %223 = vector.extract_strided_slice %212 {offsets = [0, 32], sizes = [8, 32], strides = [1, 1]} : vector<8x96xf32> to vector<8x32xf32>
    %224 = arith.addf %222, %223 : vector<8x32xf32>
    %225 = arith.negf %224 : vector<8x32xf32>
    %226 = math.exp %225 : vector<8x32xf32>
    %cst_51 = arith.constant 1.000000e+00 : f32
    %227 = vector.broadcast %cst_51 : f32 to vector<8x32xf32>
    %228 = arith.addf %227, %226 : vector<8x32xf32>
    %229 = arith.divf %227, %228 : vector<8x32xf32>
    %230 = vector.extract_strided_slice %213 {offsets = [0, 64], sizes = [8, 32], strides = [1, 1]} : vector<8x96xf32> to vector<8x32xf32>
    %231 = vector.extract_strided_slice %212 {offsets = [0, 64], sizes = [8, 32], strides = [1, 1]} : vector<8x96xf32> to vector<8x32xf32>
    %232 = arith.mulf %221, %231 : vector<8x32xf32>
    %233 = arith.addf %230, %232 : vector<8x32xf32>
    %234 = math.tanh %233 : vector<8x32xf32>
    %cst_52 = arith.constant 1.000000e+00 : f32
    %235 = vector.broadcast %cst_52 : f32 to vector<8x32xf32>
    %236 = arith.subf %235, %229 : vector<8x32xf32>
    %237 = arith.mulf %236, %234 : vector<8x32xf32>
    %238 = arith.mulf %229, %208 : vector<8x32xf32>
    %239 = arith.addf %237, %238 : vector<8x32xf32>
    %c48 = arith.constant 48 : index
    %c0_53 = arith.constant 0 : index
    %240 = vector.load %arg10[%c48, %c0_53] : memref<64x32xf32, #tpu.memory_space<vmem>>, vector<8x32xf32>
    tpu.vector_store %arg10[%c48, %c0_53], %239 {strides = array<i32>} : memref<64x32xf32, #tpu.memory_space<vmem>>, vector<8x32xf32>,
    %cst_54 = arith.constant dense<0.000000e+00> : vector<8x96xf32>
    %241 = tpu.matmul %239, %22, %cst_54 {dimension_numbers = #tpu.dot_dimension_numbers<[1], [0], [0], [1], [0, 0, 1, 1], [], []>} : vector<8x32xf32>, vector<32x96xf32>, vector<8x96xf32> -> vector<8x96xf32>
    %242 = vector.broadcast %3 : vector<1x96xf32> to vector<8x96xf32>
    %243 = arith.addf %241, %242 : vector<8x96xf32>
    %244 = vector.extract_strided_slice %21 {offsets = [56, 0], sizes = [8, 96], strides = [1, 1]} : vector<64x96xf32> to vector<8x96xf32>
    %245 = vector.extract_strided_slice %244 {offsets = [0, 0], sizes = [8, 32], strides = [1, 1]} : vector<8x96xf32> to vector<8x32xf32>
    %246 = vector.extract_strided_slice %243 {offsets = [0, 0], sizes = [8, 32], strides = [1, 1]} : vector<8x96xf32> to vector<8x32xf32>
    %247 = arith.addf %245, %246 : vector<8x32xf32>
    %248 = arith.negf %247 : vector<8x32xf32>
    %249 = math.exp %248 : vector<8x32xf32>
    %cst_55 = arith.constant 1.000000e+00 : f32
    %250 = vector.broadcast %cst_55 : f32 to vector<8x32xf32>
    %251 = arith.addf %250, %249 : vector<8x32xf32>
    %252 = arith.divf %250, %251 : vector<8x32xf32>
    %253 = vector.extract_strided_slice %244 {offsets = [0, 32], sizes = [8, 32], strides = [1, 1]} : vector<8x96xf32> to vector<8x32xf32>
    %254 = vector.extract_strided_slice %243 {offsets = [0, 32], sizes = [8, 32], strides = [1, 1]} : vector<8x96xf32> to vector<8x32xf32>
    %255 = arith.addf %253, %254 : vector<8x32xf32>
    %256 = arith.negf %255 : vector<8x32xf32>
    %257 = math.exp %256 : vector<8x32xf32>
    %cst_56 = arith.constant 1.000000e+00 : f32
    %258 = vector.broadcast %cst_56 : f32 to vector<8x32xf32>
    %259 = arith.addf %258, %257 : vector<8x32xf32>
    %260 = arith.divf %258, %259 : vector<8x32xf32>
    %261 = vector.extract_strided_slice %244 {offsets = [0, 64], sizes = [8, 32], strides = [1, 1]} : vector<8x96xf32> to vector<8x32xf32>
    %262 = vector.extract_strided_slice %243 {offsets = [0, 64], sizes = [8, 32], strides = [1, 1]} : vector<8x96xf32> to vector<8x32xf32>
    %263 = arith.mulf %252, %262 : vector<8x32xf32>
    %264 = arith.addf %261, %263 : vector<8x32xf32>
    %265 = math.tanh %264 : vector<8x32xf32>
    %cst_57 = arith.constant 1.000000e+00 : f32
    %266 = vector.broadcast %cst_57 : f32 to vector<8x32xf32>
    %267 = arith.subf %266, %260 : vector<8x32xf32>
    %268 = arith.mulf %267, %265 : vector<8x32xf32>
    %269 = arith.mulf %260, %239 : vector<8x32xf32>
    %270 = arith.addf %268, %269 : vector<8x32xf32>
    %c56 = arith.constant 56 : index
    %c0_58 = arith.constant 0 : index
    %271 = vector.load %arg10[%c56, %c0_58] : memref<64x32xf32, #tpu.memory_space<vmem>>, vector<8x32xf32>
    tpu.vector_store %arg10[%c56, %c0_58], %270 {strides = array<i32>} : memref<64x32xf32, #tpu.memory_space<vmem>>, vector<8x32xf32>,
    %c0_59 = arith.constant 0 : index
    %c0_60 = arith.constant 0 : index
    %272 = vector.load %arg10[%c0_59, %c0_60] : memref<64x32xf32, #tpu.memory_space<vmem>>, vector<64x32xf32>
    %c0_61 = arith.constant 0 : index
    %c0_62 = arith.constant 0 : index
    %273 = vector.load %arg7[%c0_61, %c0_62] : memref<32x5xf32, #tpu.memory_space<vmem>>, vector<32x5xf32>
    %cst_63 = arith.constant dense<0.000000e+00> : vector<64x5xf32>
    %274 = tpu.matmul %272, %273, %cst_63 {dimension_numbers = #tpu.dot_dimension_numbers<[1], [0], [0], [1], [0, 0, 1, 1], [], []>} : vector<64x32xf32>, vector<32x5xf32>, vector<64x5xf32> -> vector<64x5xf32>
    %275 = vector.broadcast %4 : vector<1x5xf32> to vector<64x5xf32>
    %276 = arith.addf %274, %275 : vector<64x5xf32>
    %277 = math.tanh %276 : vector<64x5xf32>
    %c0_64 = arith.constant 0 : index
    %c0_65 = arith.constant 0 : index
    %278 = vector.load %arg9[%c0_64, %c0_65] : memref<64x5xf32, #tpu.memory_space<vmem>>, vector<64x5xf32>
    tpu.vector_store %arg9[%c0_64, %c0_65], %277 {strides = array<i32>} : memref<64x5xf32, #tpu.memory_space<vmem>>, vector<64x5xf32>,
    return
  }
}

</mosaic_0001>

<llo_original>
// kernel: tpu_custom_call.1
$region0: #{tpu_custom_call.1}
  #allocation0 [shape = 'u32[]', space=smem, size = 0x4, offset = 0x4, fixed_abs, tag = 'smem constant byte address 0x4 - core index']
  #allocation1 [shape = 'u32[144,128]{1,0:T(1,128)}', space=vmem, size = 0x12000, scoped, tag = 'internal scratch']
  #allocation2 [shape = 'f32[64,32]{1,0:T(8,128)}', space=vmem, size = 0x8000, scoped, tag = 'scratch operand']
  %s0 = inlined_call_operand.vmem [shape: f32[64,5], index: 0, kind: input, shape index: {}]
  %s1 = inlined_call_operand.vmem [shape: f32[8,32], index: 1, kind: input, shape index: {}]
  %s2 = inlined_call_operand.vmem [shape: f32[8,32], index: 2, kind: input, shape index: {}]
  %s3 = inlined_call_operand.vmem [shape: f32[5,32], index: 3, kind: input, shape index: {}]
  %s4 = inlined_call_operand.vmem [shape: f32[64,32], index: 4, kind: input, shape index: {}]
  %s5 = inlined_call_operand.vmem [shape: f32[32,96], index: 5, kind: input, shape index: {}]
  %s6 = inlined_call_operand.vmem [shape: f32[32,96], index: 6, kind: input, shape index: {}]
  %s7 = inlined_call_operand.vmem [shape: f32[32,5], index: 7, kind: input, shape index: {}]
  %s8 = inlined_call_operand.vmem [shape: f32[4,96], index: 8, kind: input, shape index: {}]
  %s9 = inlined_call_operand.vmem [shape: f32[64,5], index: 9, kind: output, shape index: {}]
  %s10 = sld [smem:[#allocation0]]
  $region46: #{tpu_custom_call.1} parent=0
    _
  %s12 = ssub.s32 1, %s10
  %s13 = scalar_select 0, %s12, %s10
  // Predicated region
  $region2: #{tpu_custom_call.1} parent=0 // pred_check
    _
  $region3: #{tpu_custom_call.1} parent=0 // pred_check_branch
    %15 = sbr.rel (0) target = $region5
  $region4: #{tpu_custom_call.1} parent=0 // pred_region
    _
  $region5: #{tpu_custom_call.1} parent=0 // pred_fallthru
    _
  // Predicated region
  $region6: #{tpu_custom_call.1} parent=0 // pred_check
    _
  $region7: #{tpu_custom_call.1} parent=0 // pred_check_branch
    %17 = sbr.rel (0) target = $region9
  $region8: #{tpu_custom_call.1} parent=0 // pred_region
    _
  $region9: #{tpu_custom_call.1} parent=0 // pred_fallthru
    _
  // Predicated region
  $region10: #{tpu_custom_call.1} parent=0 // pred_check
    _
  $region11: #{tpu_custom_call.1} parent=0 // pred_check_branch
    %19 = sbr.rel (0) target = $region13
  $region12: #{tpu_custom_call.1} parent=0 // pred_region
    _
  $region13: #{tpu_custom_call.1} parent=0 // pred_fallthru
    _
  // Predicated region
  $region14: #{tpu_custom_call.1} parent=0 // pred_check
    _
  $region15: #{tpu_custom_call.1} parent=0 // pred_check_branch
    %21 = sbr.rel (0) target = $region17
  $region16: #{tpu_custom_call.1} parent=0 // pred_region
    _
  $region17: #{tpu_custom_call.1} parent=0 // pred_fallthru
    _
  // Predicated region
  $region18: #{tpu_custom_call.1} parent=0 // pred_check
    _
  $region19: #{tpu_custom_call.1} parent=0 // pred_check_branch
    %23 = sbr.rel (0) target = $region21
  $region20: #{tpu_custom_call.1} parent=0 // pred_region
    _
  $region21: #{tpu_custom_call.1} parent=0 // pred_fallthru
    _
  // Predicated region
  $region22: #{tpu_custom_call.1} parent=0 // pred_check
    _
  $region23: #{tpu_custom_call.1} parent=0 // pred_check_branch
    %25 = sbr.rel (0) target = $region25
  $region24: #{tpu_custom_call.1} parent=0 // pred_region
    _
  $region25: #{tpu_custom_call.1} parent=0 // pred_fallthru
    _
  // Predicated region
  $region26: #{tpu_custom_call.1} parent=0 // pred_check
    _
  $region27: #{tpu_custom_call.1} parent=0 // pred_check_branch
    %27 = sbr.rel (0) target = $region29
  $region28: #{tpu_custom_call.1} parent=0 // pred_region
    _
  $region29: #{tpu_custom_call.1} parent=0 // pred_fallthru
    _
  // Predicated region
  $region30: #{tpu_custom_call.1} parent=0 // pred_check
    _
  $region31: #{tpu_custom_call.1} parent=0 // pred_check_branch
    %29 = sbr.rel (0) target = $region33
  $region32: #{tpu_custom_call.1} parent=0 // pred_region
    _
  $region33: #{tpu_custom_call.1} parent=0 // pred_fallthru
    _
  // Predicated region
  $region34: #{tpu_custom_call.1} parent=0 // pred_check
    _
  $region35: #{tpu_custom_call.1} parent=0 // pred_check_branch
    %31 = sbr.rel (0) target = $region37
  $region36: #{tpu_custom_call.1} parent=0 // pred_region
    _
  $region37: #{tpu_custom_call.1} parent=0 // pred_fallthru
    _
  %v32 = vld [vmem:[%s8] sm:$0xf]
  %v33 = vld [vmem:[%s4] sm:$0xff]
  %v34 = vld [vmem:[%s4 + $0x8] sm:$0xff]
  %v35 = vld [vmem:[%s4 + $0x10] sm:$0xff]
  %v36 = vld [vmem:[%s4 + $0x18] sm:$0xff]
  %v37 = vld [vmem:[%s4 + $0x20] sm:$0xff]
  %v38 = vld [vmem:[%s4 + $0x28] sm:$0xff]
  %v39 = vld [vmem:[%s4 + $0x30] sm:$0xff]
  %v40 = vld [vmem:[%s4 + $0x38] sm:$0xff]
  %v41 = vld [vmem:[%s0] sm:$0xff]
  %v42 = vld [vmem:[%s0 + $0x8] sm:$0xff]
  %v43 = vld [vmem:[%s0 + $0x10] sm:$0xff]
  %v44 = vld [vmem:[%s0 + $0x18] sm:$0xff]
  %v45 = vld [vmem:[%s0 + $0x20] sm:$0xff]
  %v46 = vld [vmem:[%s0 + $0x28] sm:$0xff]
  %v47 = vld [vmem:[%s0 + $0x30] sm:$0xff]
  %v48 = vld [vmem:[%s0 + $0x38] sm:$0xff]
  %v49 = vld [vmem:[%s3] sm:$0x1f]
  %vm50 = vcmask 39936
  %v52 = vsel %vm50, %v41, 0
  %v55 = vsel %vm50, %v42, 0
  %v58 = vsel %vm50, %v43, 0
  %v61 = vsel %vm50, %v44, 0
  %v64 = vsel %vm50, %v45, 0
  %v67 = vsel %vm50, %v46, 0
  %v70 = vsel %vm50, %v47, 0
  %v73 = vsel %vm50, %v48, 0
  %vm75 = vcmask 1044480
  %v77 = vsel %vm75, %v49, 0
  %79 = vmatprep.subr.mxu0 0.0
  %80 = vmatpush1.msra.mxu0 %v77
  %81 = vmatprep.subr.mxu0 0.0
  %82 = vmatpush1.msra.mxu0 0.0
  %83 = vmatprep.subr.mxu0 0.0
  %84 = vmatpush1.msra.mxu0 0.0
  %85 = vmatprep.subr.mxu0 0.0
  %86 = vmatpush1.msra.mxu0 0.0
  %87 = vmatprep.subr.mxu0 0.0
  %88 = vmatpush1.msra.mxu0 0.0
  %89 = vmatprep.subr.mxu0 0.0
  %90 = vmatpush1.msra.mxu0 0.0
  %91 = vmatprep.subr.mxu0 0.0
  %92 = vmatpush1.msra.mxu0 0.0
  %93 = vmatprep.subr.mxu0 0.0
  %94 = vmatpush1.msra.mxu0 0.0
  %95 = vmatprep.subr.mxu0 0.0
  %96 = vmatpush1.msra.mxu0 0.0
  %97 = vmatprep.subr.mxu0 0.0
  %98 = vmatpush1.msra.mxu0 0.0
  %99 = vmatprep.subr.mxu0 0.0
  %100 = vmatpush1.msra.mxu0 0.0
  %101 = vmatprep.subr.mxu0 0.0
  %102 = vmatpush1.msra.mxu0 0.0
  %103 = vmatprep.subr.mxu0 0.0
  %104 = vmatpush1.msra.mxu0 0.0
  %105 = vmatprep.subr.mxu0 0.0
  %106 = vmatpush1.msra.mxu0 0.0
  %107 = vmatprep.subr.mxu0 0.0
  %108 = vmatpush1.msra.mxu0 0.0
  %109 = vmatprep.subr.mxu0 0.0
  %110 = vmatpush1.msra.mxu0 0.0
  %111 = vmatprep.subr.mxu0 0.0
  %112 = vmatpush1.msra.mxu0 0.0
  %113 = vmatprep.subr.mxu0 0.0
  %114 = vmatpush1.msra.mxu0 0.0
  %115 = vmatprep.subr.mxu0 0.0
  %116 = vmatpush1.msra.mxu0 0.0
  %117 = vmatprep.subr.mxu0 0.0
  %118 = vmatpush1.msra.mxu0 0.0
  %119 = vmatprep.subr.mxu0 0.0
  %120 = vmatpush1.msra.mxu0 0.0
  %121 = vmatprep.subr.mxu0 0.0
  %122 = vmatpush1.msra.mxu0 0.0
  %123 = vmatprep.subr.mxu0 0.0
  %124 = vmatpush1.msra.mxu0 0.0
  %125 = vmatprep.subr.mxu0 0.0
  %126 = vmatpush1.msra.mxu0 0.0
  %127 = vmatprep.subr.mxu0 0.0
  %128 = vmatpush1.msra.mxu0 0.0
  %129 = vmatprep.subr.mxu0 0.0
  %130 = vmatpush1.msra.mxu0 0.0
  %131 = vmatprep.subr.mxu0 0.0
  %132 = vmatpush1.msra.mxu0 0.0
  %133 = vmatprep.subr.mxu0 0.0
  %134 = vmatpush1.msra.mxu0 0.0
  %135 = vmatprep.subr.mxu0 0.0
  %136 = vmatpush1.msra.mxu0 0.0
  %137 = vmatprep.subr.mxu0 0.0
  %138 = vmatpush1.msra.mxu0 0.0
  %139 = vmatprep.subr.mxu0 0.0
  %140 = vmatpush1.msra.mxu0 0.0
  %141 = vmatprep.subr.mxu0 0.0
  %142 = vmatpush1.msra.mxu0 0.0
  %143 = vmatprep.mubr.f32.mxu0 0.0
  %144 = vmatmul.mubr.f32.gmra.mrb[0].mxu0 %v52
  %v145 = vpop.f32.mrb[0].mxu0
  %v146 = vadd.f32 0.0, %v145
  %v147 = vpop.f32.mrb[0].mxu0
  %148 = vmatprep.mubr.f32.mxu0 0.0
  %149 = vmatmul.mubr.f32.gmra.mrb[0].mxu0 %v55
  %v150 = vpop.f32.mrb[0].mxu0
  %v151 = vadd.f32 0.0, %v150
  %v152 = vpop.f32.mrb[0].mxu0
  %153 = vmatprep.mubr.f32.mxu0 0.0
  %154 = vmatmul.mubr.f32.gmra.mrb[0].mxu0 %v58
  %v155 = vpop.f32.mrb[0].mxu0
  %v156 = vadd.f32 0.0, %v155
  %v157 = vpop.f32.mrb[0].mxu0
  %158 = vmatprep.mubr.f32.mxu0 0.0
  %159 = vmatmul.mubr.f32.gmra.mrb[0].mxu0 %v61
  %v160 = vpop.f32.mrb[0].mxu0
  %v161 = vadd.f32 0.0, %v160
  %v162 = vpop.f32.mrb[0].mxu0
  %163 = vmatprep.mubr.f32.mxu0 0.0
  %164 = vmatmul.mubr.f32.gmra.mrb[0].mxu0 %v64
  %v165 = vpop.f32.mrb[0].mxu0
  %v166 = vadd.f32 0.0, %v165
  %v167 = vpop.f32.mrb[0].mxu0
  %168 = vmatprep.mubr.f32.mxu0 0.0
  %169 = vmatmul.mubr.f32.gmra.mrb[0].mxu0 %v67
  %v170 = vpop.f32.mrb[0].mxu0
  %v171 = vadd.f32 0.0, %v170
  %v172 = vpop.f32.mrb[0].mxu0
  %173 = vmatprep.mubr.f32.mxu0 0.0
  %174 = vmatmul.mubr.f32.gmra.mrb[0].mxu0 %v70
  %v175 = vpop.f32.mrb[0].mxu0
  %v176 = vadd.f32 0.0, %v175
  %v177 = vpop.f32.mrb[0].mxu0
  %178 = vmatprep.mubr.f32.mxu0 0.0
  %179 = vmatmul.mubr.f32.gmra.mrb[0].mxu0 %v73
  %v180 = vpop.f32.mrb[0].mxu0
  %v181 = vadd.f32 0.0, %v180
  %v182 = vpop.f32.mrb[0].mxu0
  %183 = vdwg.mxu0
  %v184 = vld [vmem:[%s1] sm:$0xff]
  %v185 = vlaneseq
  %v186 = vshrl.u32 %v185, 7
  %v187 = vsub.s32 0, %v186
  %v188 = vrot.slane %v32, %v187
  %vm189 = vcmask 261120
  %v191 = vsel %vm189, %v184, 0
  %193 = vmatprep.subr.mxu0 0.0
  %194 = vmatpush1.msra.mxu0 %v37
  %195 = vmatprep.subr.mxu0 0.0
  %196 = vmatpush1.msra.mxu0 %v38
  %197 = vmatprep.subr.mxu0 0.0
  %198 = vmatpush1.msra.mxu0 %v39
  %199 = vmatprep.subr.mxu0 0.0
  %200 = vmatpush1.msra.mxu0 %v40
  %201 = vmatprep.subr.mxu0 0.0
  %202 = vmatpush1.msra.mxu0 0.0
  %203 = vmatprep.subr.mxu0 0.0
  %204 = vmatpush1.msra.mxu0 0.0
  %205 = vmatprep.subr.mxu0 0.0
  %206 = vmatpush1.msra.mxu0 0.0
  %207 = vmatprep.subr.mxu0 0.0
  %208 = vmatpush1.msra.mxu0 0.0
  %209 = vmatprep.subr.mxu0 0.0
  %210 = vmatpush1.msra.mxu0 0.0
  %211 = vmatprep.subr.mxu0 0.0
  %212 = vmatpush1.msra.mxu0 0.0
  %213 = vmatprep.subr.mxu0 0.0
  %214 = vmatpush1.msra.mxu0 0.0
  %215 = vmatprep.subr.mxu0 0.0
  %216 = vmatpush1.msra.mxu0 0.0
  %217 = vmatprep.subr.mxu0 0.0
  %218 = vmatpush1.msra.mxu0 0.0
  %219 = vmatprep.subr.mxu0 0.0
  %220 = vmatpush1.msra.mxu0 0.0
  %221 = vmatprep.subr.mxu0 0.0
  %222 = vmatpush1.msra.mxu0 0.0
  %223 = vmatprep.subr.mxu0 0.0
  %224 = vmatpush1.msra.mxu0 0.0
  %225 = vmatprep.subr.mxu0 0.0
  %226 = vmatpush1.msra.mxu0 0.0
  %227 = vmatprep.subr.mxu0 0.0
  %228 = vmatpush1.msra.mxu0 0.0
  %229 = vmatprep.subr.mxu0 0.0
  %230 = vmatpush1.msra.mxu0 0.0
  %231 = vmatprep.subr.mxu0 0.0
  %232 = vmatpush1.msra.mxu0 0.0
  %233 = vmatprep.subr.mxu0 0.0
  %234 = vmatpush1.msra.mxu0 0.0
  %235 = vmatprep.subr.mxu0 0.0
  %236 = vmatpush1.msra.mxu0 0.0
  %237 = vmatprep.subr.mxu0 0.0
  %238 = vmatpush1.msra.mxu0 0.0
  %239 = vmatprep.subr.mxu0 0.0
  %240 = vmatpush1.msra.mxu0 0.0
  %241 = vmatprep.subr.mxu0 0.0
  %242 = vmatpush1.msra.mxu0 0.0
  %243 = vmatprep.subr.mxu0 0.0
  %244 = vmatpush1.msra.mxu0 0.0
  %245 = vmatprep.subr.mxu0 0.0
  %246 = vmatpush1.msra.mxu0 0.0
  %247 = vmatprep.subr.mxu0 0.0
  %248 = vmatpush1.msra.mxu0 0.0
  %249 = vmatprep.subr.mxu0 0.0
  %250 = vmatpush1.msra.mxu0 0.0
  %251 = vmatprep.subr.mxu0 0.0
  %252 = vmatpush1.msra.mxu0 0.0
  %253 = vmatprep.subr.mxu0 0.0
  %254 = vmatpush1.msra.mxu0 0.0
  %255 = vmatprep.subr.mxu0 0.0
  %256 = vmatpush1.msra.mxu0 0.0
  %257 = vmatprep.mubr.f32.mxu0 0.0
  %258 = vmatmul.mubr.f32.gmra.mrb[0].mxu0 %v191
  %v259 = vpop.f32.mrb[0].mxu0
  %v260 = vadd.f32 %v188, %v259
  %v261 = vpop.f32.mrb[0].mxu0
  %262 = vdwg.mxu0
  %v264 = vsel %vm189, %v146, 0
  %v267 = vsel %vm189, %v151, 0
  %v270 = vsel %vm189, %v156, 0
  %v273 = vsel %vm189, %v161, 0
  %v276 = vsel %vm189, %v166, 0
  %v279 = vsel %vm189, %v171, 0
  %v282 = vsel %vm189, %v176, 0
  %v285 = vsel %vm189, %v181, 0
  %287 = vmatprep.subr.mxu0 0.0
  %288 = vmatpush1.msra.mxu0 %v33
  %289 = vmatprep.subr.mxu0 0.0
  %290 = vmatpush1.msra.mxu0 %v34
  %291 = vmatprep.subr.mxu0 0.0
  %292 = vmatpush1.msra.mxu0 %v35
  %293 = vmatprep.subr.mxu0 0.0
  %294 = vmatpush1.msra.mxu0 %v36
  %295 = vmatprep.subr.mxu0 0.0
  %296 = vmatpush1.msra.mxu0 0.0
  %297 = vmatprep.subr.mxu0 0.0
  %298 = vmatpush1.msra.mxu0 0.0
  %299 = vmatprep.subr.mxu0 0.0
  %300 = vmatpush1.msra.mxu0 0.0
  %301 = vmatprep.subr.mxu0 0.0
  %302 = vmatpush1.msra.mxu0 0.0
  %303 = vmatprep.subr.mxu0 0.0
  %304 = vmatpush1.msra.mxu0 0.0
  %305 = vmatprep.subr.mxu0 0.0
  %306 = vmatpush1.msra.mxu0 0.0
  %307 = vmatprep.subr.mxu0 0.0
  %308 = vmatpush1.msra.mxu0 0.0
  %309 = vmatprep.subr.mxu0 0.0
  %310 = vmatpush1.msra.mxu0 0.0
  %311 = vmatprep.subr.mxu0 0.0
  %312 = vmatpush1.msra.mxu0 0.0
  %313 = vmatprep.subr.mxu0 0.0
  %314 = vmatpush1.msra.mxu0 0.0
  %315 = vmatprep.subr.mxu0 0.0
  %316 = vmatpush1.msra.mxu0 0.0
  %317 = vmatprep.subr.mxu0 0.0
  %318 = vmatpush1.msra.mxu0 0.0
  %319 = vmatprep.subr.mxu0 0.0
  %320 = vmatpush1.msra.mxu0 0.0
  %321 = vmatprep.subr.mxu0 0.0
  %322 = vmatpush1.msra.mxu0 0.0
  %323 = vmatprep.subr.mxu0 0.0
  %324 = vmatpush1.msra.mxu0 0.0
  %325 = vmatprep.subr.mxu0 0.0
  %326 = vmatpush1.msra.mxu0 0.0
  %327 = vmatprep.subr.mxu0 0.0
  %328 = vmatpush1.msra.mxu0 0.0
  %329 = vmatprep.subr.mxu0 0.0
  %330 = vmatpush1.msra.mxu0 0.0
  %331 = vmatprep.subr.mxu0 0.0
  %332 = vmatpush1.msra.mxu0 0.0
  %333 = vmatprep.subr.mxu0 0.0
  %334 = vmatpush1.msra.mxu0 0.0
  %335 = vmatprep.subr.mxu0 0.0
  %336 = vmatpush1.msra.mxu0 0.0
  %337 = vmatprep.subr.mxu0 0.0
  %338 = vmatpush1.msra.mxu0 0.0
  %339 = vmatprep.subr.mxu0 0.0
  %340 = vmatpush1.msra.mxu0 0.0
  %341 = vmatprep.subr.mxu0 0.0
  %342 = vmatpush1.msra.mxu0 0.0
  %343 = vmatprep.subr.mxu0 0.0
  %344 = vmatpush1.msra.mxu0 0.0
  %345 = vmatprep.subr.mxu0 0.0
  %346 = vmatpush1.msra.mxu0 0.0
  %347 = vmatprep.subr.mxu0 0.0
  %348 = vmatpush1.msra.mxu0 0.0
  %349 = vmatprep.subr.mxu0 0.0
  %350 = vmatpush1.msra.mxu0 0.0
  %351 = vmatprep.mubr.f32.mxu0 0.0
  %352 = vmatmul.mubr.f32.gmra.mrb[0].mxu0 %v264
  %v353 = vpop.f32.mrb[0].mxu0
  %v354 = vadd.f32 %v260, %v353
  %v355 = vpop.f32.mrb[0].mxu0
  %356 = vmatprep.mubr.f32.mxu0 0.0
  %357 = vmatmul.mubr.f32.gmra.mrb[0].mxu0 %v267
  %v358 = vpop.f32.mrb[0].mxu0
  %v359 = vadd.f32 %v260, %v358
  %v360 = vpop.f32.mrb[0].mxu0
  %361 = vmatprep.mubr.f32.mxu0 0.0
  %362 = vmatmul.mubr.f32.gmra.mrb[0].mxu0 %v270
  %v363 = vpop.f32.mrb[0].mxu0
  %v364 = vadd.f32 %v260, %v363
  %v365 = vpop.f32.mrb[0].mxu0
  %366 = vmatprep.mubr.f32.mxu0 0.0
  %367 = vmatmul.mubr.f32.gmra.mrb[0].mxu0 %v273
  %v368 = vpop.f32.mrb[0].mxu0
  %v369 = vadd.f32 %v260, %v368
  %v370 = vpop.f32.mrb[0].mxu0
  %371 = vmatprep.mubr.f32.mxu0 0.0
  %372 = vmatmul.mubr.f32.gmra.mrb[0].mxu0 %v276
  %v373 = vpop.f32.mrb[0].mxu0
  %v374 = vadd.f32 %v260, %v373
  %v375 = vpop.f32.mrb[0].mxu0
  %376 = vmatprep.mubr.f32.mxu0 0.0
  %377 = vmatmul.mubr.f32.gmra.mrb[0].mxu0 %v279
  %v378 = vpop.f32.mrb[0].mxu0
  %v379 = vadd.f32 %v260, %v378
  %v380 = vpop.f32.mrb[0].mxu0
  %381 = vmatprep.mubr.f32.mxu0 0.0
  %382 = vmatmul.mubr.f32.gmra.mrb[0].mxu0 %v282
  %v383 = vpop.f32.mrb[0].mxu0
  %v384 = vadd.f32 %v260, %v383
  %v385 = vpop.f32.mrb[0].mxu0
  %386 = vmatprep.mubr.f32.mxu0 0.0
  %387 = vmatmul.mubr.f32.gmra.mrb[0].mxu0 %v285
  %v388 = vpop.f32.mrb[0].mxu0
  %v389 = vadd.f32 %v260, %v388
  %v390 = vpop.f32.mrb[0].mxu0
  %391 = vdwg.mxu0
  %v392 = vld [vmem:[%s5] sm:$0xff]
  %v393 = vld [vmem:[%s5 + $0x8] sm:$0xff]
  %v394 = vld [vmem:[%s5 + $0x10] sm:$0xff]
  %v395 = vld [vmem:[%s5 + $0x18] sm:$0xff]
  %v396 = vlaneseq
  %v397 = vshrl.u32 %v396, 7
  %v398 = vsub.s32 1, %v397
  %v399 = vrot.slane %v32, %v398
  %v401 = vsel %vm189, %v354, 0
  %v404 = vsel %vm189, %v359, 0
  %v407 = vsel %vm189, %v364, 0
  %v410 = vsel %vm189, %v369, 0
  %v413 = vsel %vm189, %v374, 0
  %v416 = vsel %vm189, %v379, 0
  %v419 = vsel %vm189, %v384, 0
  %v422 = vsel %vm189, %v389, 0
  %424 = vmatprep.subr.mxu0 0.0
  %425 = vmatpush1.msra.mxu0 %v392
  %426 = vmatprep.subr.mxu0 0.0
  %427 = vmatpush1.msra.mxu0 %v393
  %428 = vmatprep.subr.mxu0 0.0
  %429 = vmatpush1.msra.mxu0 %v394
  %430 = vmatprep.subr.mxu0 0.0
  %431 = vmatpush1.msra.mxu0 %v395
  %432 = vmatprep.subr.mxu0 0.0
  %433 = vmatpush1.msra.mxu0 0.0
  %434 = vmatprep.subr.mxu0 0.0
  %435 = vmatpush1.msra.mxu0 0.0
  %436 = vmatprep.subr.mxu0 0.0
  %437 = vmatpush1.msra.mxu0 0.0
  %438 = vmatprep.subr.mxu0 0.0
  %439 = vmatpush1.msra.mxu0 0.0
  %440 = vmatprep.subr.mxu0 0.0
  %441 = vmatpush1.msra.mxu0 0.0
  %442 = vmatprep.subr.mxu0 0.0
  %443 = vmatpush1.msra.mxu0 0.0
  %444 = vmatprep.subr.mxu0 0.0
  %445 = vmatpush1.msra.mxu0 0.0
  %446 = vmatprep.subr.mxu0 0.0
  %447 = vmatpush1.msra.mxu0 0.0
  %448 = vmatprep.subr.mxu0 0.0
  %449 = vmatpush1.msra.mxu0 0.0
  %450 = vmatprep.subr.mxu0 0.0
  %451 = vmatpush1.msra.mxu0 0.0
  %452 = vmatprep.subr.mxu0 0.0
  %453 = vmatpush1.msra.mxu0 0.0
  %454 = vmatprep.subr.mxu0 0.0
  %455 = vmatpush1.msra.mxu0 0.0
  %456 = vmatprep.subr.mxu0 0.0
  %457 = vmatpush1.msra.mxu0 0.0
  %458 = vmatprep.subr.mxu0 0.0
  %459 = vmatpush1.msra.mxu0 0.0
  %460 = vmatprep.subr.mxu0 0.0
  %461 = vmatpush1.msra.mxu0 0.0
  %462 = vmatprep.subr.mxu0 0.0
  %463 = vmatpush1.msra.mxu0 0.0
  %464 = vmatprep.subr.mxu0 0.0
  %465 = vmatpush1.msra.mxu0 0.0
  %466 = vmatprep.subr.mxu0 0.0
  %467 = vmatpush1.msra.mxu0 0.0
  %468 = vmatprep.subr.mxu0 0.0
  %469 = vmatpush1.msra.mxu0 0.0
  %470 = vmatprep.subr.mxu0 0.0
  %471 = vmatpush1.msra.mxu0 0.0
  %472 = vmatprep.subr.mxu0 0.0
  %473 = vmatpush1.msra.mxu0 0.0
  %474 = vmatprep.subr.mxu0 0.0
  %475 = vmatpush1.msra.mxu0 0.0
  %476 = vmatprep.subr.mxu0 0.0
  %477 = vmatpush1.msra.mxu0 0.0
  %478 = vmatprep.subr.mxu0 0.0
  %479 = vmatpush1.msra.mxu0 0.0
  %480 = vmatprep.subr.mxu0 0.0
  %481 = vmatpush1.msra.mxu0 0.0
  %482 = vmatprep.subr.mxu0 0.0
  %483 = vmatpush1.msra.mxu0 0.0
  %484 = vmatprep.subr.mxu0 0.0
  %485 = vmatpush1.msra.mxu0 0.0
  %486 = vmatprep.subr.mxu0 0.0
  %487 = vmatpush1.msra.mxu0 0.0
  %488 = vmatprep.mubr.f32.mxu0 0.0
  %489 = vmatmul.mubr.f32.gmra.mrb[0].mxu0 %v401
  %v490 = vpop.f32.mrb[0].mxu0
  %v491 = vadd.f32 %v399, %v490
  %v492 = vpop.f32.mrb[0].mxu0
  %493 = vmatprep.mubr.f32.mxu0 0.0
  %494 = vmatmul.mubr.f32.gmra.mrb[0].mxu0 %v404
  %v495 = vpop.f32.mrb[0].mxu0
  %v496 = vadd.f32 %v399, %v495
  %v497 = vpop.f32.mrb[0].mxu0
  %498 = vmatprep.mubr.f32.mxu0 0.0
  %499 = vmatmul.mubr.f32.gmra.mrb[0].mxu0 %v407
  %v500 = vpop.f32.mrb[0].mxu0
  %v501 = vadd.f32 %v399, %v500
  %v502 = vpop.f32.mrb[0].mxu0
  %503 = vmatprep.mubr.f32.mxu0 0.0
  %504 = vmatmul.mubr.f32.gmra.mrb[0].mxu0 %v410
  %v505 = vpop.f32.mrb[0].mxu0
  %v506 = vadd.f32 %v399, %v505
  %v507 = vpop.f32.mrb[0].mxu0
  %508 = vmatprep.mubr.f32.mxu0 0.0
  %509 = vmatmul.mubr.f32.gmra.mrb[0].mxu0 %v413
  %v510 = vpop.f32.mrb[0].mxu0
  %v511 = vadd.f32 %v399, %v510
  %v512 = vpop.f32.mrb[0].mxu0
  %513 = vmatprep.mubr.f32.mxu0 0.0
  %514 = vmatmul.mubr.f32.gmra.mrb[0].mxu0 %v416
  %v515 = vpop.f32.mrb[0].mxu0
  %v516 = vadd.f32 %v399, %v515
  %v517 = vpop.f32.mrb[0].mxu0
  %518 = vmatprep.mubr.f32.mxu0 0.0
  %519 = vmatmul.mubr.f32.gmra.mrb[0].mxu0 %v419
  %v520 = vpop.f32.mrb[0].mxu0
  %v521 = vadd.f32 %v399, %v520
  %v522 = vpop.f32.mrb[0].mxu0
  %523 = vmatprep.mubr.f32.mxu0 0.0
  %524 = vmatmul.mubr.f32.gmra.mrb[0].mxu0 %v422
  %v525 = vpop.f32.mrb[0].mxu0
  %v526 = vadd.f32 %v399, %v525
  %v527 = vpop.f32.mrb[0].mxu0
  %528 = vdwg.mxu0
  %v529 = vld [vmem:[%s6] sm:$0xff]
  %v530 = vld [vmem:[%s6 + $0x8] sm:$0xff]
  %v531 = vld [vmem:[%s6 + $0x10] sm:$0xff]
  %v532 = vld [vmem:[%s6 + $0x18] sm:$0xff]
  %v533 = vld [vmem:[%s2] sm:$0xff]
  %v534 = vlaneseq
  %v535 = vshrl.u32 %v534, 7
  %v536 = vsub.s32 2, %v535
  %v537 = vrot.slane %v32, %v536
  %v539 = vsel %vm189, %v533, 0
  %541 = vmatprep.subr.mxu0 0.0
  %542 = vmatpush1.msra.mxu0 %v529
  %543 = vmatprep.subr.mxu0 0.0
  %544 = vmatpush1.msra.mxu0 %v530
  %545 = vmatprep.subr.mxu0 0.0
  %546 = vmatpush1.msra.mxu0 %v531
  %547 = vmatprep.subr.mxu0 0.0
  %548 = vmatpush1.msra.mxu0 %v532
  %549 = vmatprep.subr.mxu0 0.0
  %550 = vmatpush1.msra.mxu0 0.0
  %551 = vmatprep.subr.mxu0 0.0
  %552 = vmatpush1.msra.mxu0 0.0
  %553 = vmatprep.subr.mxu0 0.0
  %554 = vmatpush1.msra.mxu0 0.0
  %555 = vmatprep.subr.mxu0 0.0
  %556 = vmatpush1.msra.mxu0 0.0
  %557 = vmatprep.subr.mxu0 0.0
  %558 = vmatpush1.msra.mxu0 0.0
  %559 = vmatprep.subr.mxu0 0.0
  %560 = vmatpush1.msra.mxu0 0.0
  %561 = vmatprep.subr.mxu0 0.0
  %562 = vmatpush1.msra.mxu0 0.0
  %563 = vmatprep.subr.mxu0 0.0
  %564 = vmatpush1.msra.mxu0 0.0
  %565 = vmatprep.subr.mxu0 0.0
  %566 = vmatpush1.msra.mxu0 0.0
  %567 = vmatprep.subr.mxu0 0.0
  %568 = vmatpush1.msra.mxu0 0.0
  %569 = vmatprep.subr.mxu0 0.0
  %570 = vmatpush1.msra.mxu0 0.0
  %571 = vmatprep.subr.mxu0 0.0
  %572 = vmatpush1.msra.mxu0 0.0
  %573 = vmatprep.subr.mxu0 0.0
  %574 = vmatpush1.msra.mxu0 0.0
  %575 = vmatprep.subr.mxu0 0.0
  %576 = vmatpush1.msra.mxu0 0.0
  %577 = vmatprep.subr.mxu0 0.0
  %578 = vmatpush1.msra.mxu0 0.0
  %579 = vmatprep.subr.mxu0 0.0
  %580 = vmatpush1.msra.mxu0 0.0
  %581 = vmatprep.subr.mxu0 0.0
  %582 = vmatpush1.msra.mxu0 0.0
  %583 = vmatprep.subr.mxu0 0.0
  %584 = vmatpush1.msra.mxu0 0.0
  %585 = vmatprep.subr.mxu0 0.0
  %586 = vmatpush1.msra.mxu0 0.0
  %587 = vmatprep.subr.mxu0 0.0
  %588 = vmatpush1.msra.mxu0 0.0
  %589 = vmatprep.subr.mxu0 0.0
  %590 = vmatpush1.msra.mxu0 0.0
  %591 = vmatprep.subr.mxu0 0.0
  %592 = vmatpush1.msra.mxu0 0.0
  %593 = vmatprep.subr.mxu0 0.0
  %594 = vmatpush1.msra.mxu0 0.0
  %595 = vmatprep.subr.mxu0 0.0
  %596 = vmatpush1.msra.mxu0 0.0
  %597 = vmatprep.subr.mxu0 0.0
  %598 = vmatpush1.msra.mxu0 0.0
  %599 = vmatprep.subr.mxu0 0.0
  %600 = vmatpush1.msra.mxu0 0.0
  %601 = vmatprep.subr.mxu0 0.0
  %602 = vmatpush1.msra.mxu0 0.0
  %603 = vmatprep.subr.mxu0 0.0
  %604 = vmatpush1.msra.mxu0 0.0
  %605 = vmatprep.mubr.f32.mxu0 0.0
  %606 = vmatmul.mubr.f32.gmra.mrb[0].mxu0 %v539
  %v607 = vpop.f32.mrb[0].mxu0
  %v608 = vadd.f32 %v537, %v607
  %v609 = vpop.f32.mrb[0].mxu0
  %610 = vdwg.mxu0
  %v611 = vadd.f32 %v491, %v608
  %v612 = vxor.u32 %v611, 2147483648
  %v613 = vmul.f32 %v612, 1.442695
  %v614 = vpow.pop %v613
  %v615 = vadd.f32 %v614, 1.0
  %v616 = vrcp.pop %v615
  %v617 = vmul.f32 1.0, %v616
  %619 = vrot.lane.b32.xlu0 %v608, 64
  %v620 = vpop.permute.xlu0 %619
  %v622 = vmul.f32 %v617, %v620
  %624 = vrot.lane.b32.xlu0 %v622, 64
  %v625 = vpop.permute.xlu0 %624
  %v627 = vadd.f32 %v491, %v625
  %v628 = vtanh.pop %v627
  %v629 = vsub.f32 1.0, %v617
  %631 = vrot.lane.b32.xlu0 %v628, 96
  %v632 = vpop.permute.xlu0 %631
  %v634 = vmul.f32 %v629, %v632
  %635 = vrot.lane.b32.xlu0 %v533, 32
  %v636 = vpop.permute.xlu0 %635
  %v638 = vmul.f32 %v617, %v636
  %v639 = vadd.f32 %v634, %v638
  %641 = vrot.lane.b32.xlu0 %v639, 96
  %v642 = vpop.permute.xlu0 %641
  %644 = vst.msk [vmem:[#allocation2] sm:$0xff] %vm189, %v642
  %v645 = vsel %vm189, %v642, 0
  %647 = vmatprep.subr.mxu0 0.0
  %648 = vmatpush1.msra.mxu0 %v529
  %649 = vmatprep.subr.mxu0 0.0
  %650 = vmatpush1.msra.mxu0 %v530
  %651 = vmatprep.subr.mxu0 0.0
  %652 = vmatpush1.msra.mxu0 %v531
  %653 = vmatprep.subr.mxu0 0.0
  %654 = vmatpush1.msra.mxu0 %v532
  %655 = vmatprep.subr.mxu0 0.0
  %656 = vmatpush1.msra.mxu0 0.0
  %657 = vmatprep.subr.mxu0 0.0
  %658 = vmatpush1.msra.mxu0 0.0
  %659 = vmatprep.subr.mxu0 0.0
  %660 = vmatpush1.msra.mxu0 0.0
  %661 = vmatprep.subr.mxu0 0.0
  %662 = vmatpush1.msra.mxu0 0.0
  %663 = vmatprep.subr.mxu0 0.0
  %664 = vmatpush1.msra.mxu0 0.0
  %665 = vmatprep.subr.mxu0 0.0
  %666 = vmatpush1.msra.mxu0 0.0
  %667 = vmatprep.subr.mxu0 0.0
  %668 = vmatpush1.msra.mxu0 0.0
  %669 = vmatprep.subr.mxu0 0.0
  %670 = vmatpush1.msra.mxu0 0.0
  %671 = vmatprep.subr.mxu0 0.0
  %672 = vmatpush1.msra.mxu0 0.0
  %673 = vmatprep.subr.mxu0 0.0
  %674 = vmatpush1.msra.mxu0 0.0
  %675 = vmatprep.subr.mxu0 0.0
  %676 = vmatpush1.msra.mxu0 0.0
  %677 = vmatprep.subr.mxu0 0.0
  %678 = vmatpush1.msra.mxu0 0.0
  %679 = vmatprep.subr.mxu0 0.0
  %680 = vmatpush1.msra.mxu0 0.0
  %681 = vmatprep.subr.mxu0 0.0
  %682 = vmatpush1.msra.mxu0 0.0
  %683 = vmatprep.subr.mxu0 0.0
  %684 = vmatpush1.msra.mxu0 0.0
  %685 = vmatprep.subr.mxu0 0.0
  %686 = vmatpush1.msra.mxu0 0.0
  %687 = vmatprep.subr.mxu0 0.0
  %688 = vmatpush1.msra.mxu0 0.0
  %689 = vmatprep.subr.mxu0 0.0
  %690 = vmatpush1.msra.mxu0 0.0
  %691 = vmatprep.subr.mxu0 0.0
  %692 = vmatpush1.msra.mxu0 0.0
  %693 = vmatprep.subr.mxu0 0.0
  %694 = vmatpush1.msra.mxu0 0.0
  %695 = vmatprep.subr.mxu0 0.0
  %696 = vmatpush1.msra.mxu0 0.0
  %697 = vmatprep.subr.mxu0 0.0
  %698 = vmatpush1.msra.mxu0 0.0
  %699 = vmatprep.subr.mxu0 0.0
  %700 = vmatpush1.msra.mxu0 0.0
  %701 = vmatprep.subr.mxu0 0.0
  %702 = vmatpush1.msra.mxu0 0.0
  %703 = vmatprep.subr.mxu0 0.0
  %704 = vmatpush1.msra.mxu0 0.0
  %705 = vmatprep.subr.mxu0 0.0
  %706 = vmatpush1.msra.mxu0 0.0
  %707 = vmatprep.subr.mxu0 0.0
  %708 = vmatpush1.msra.mxu0 0.0
  %709 = vmatprep.subr.mxu0 0.0
  %710 = vmatpush1.msra.mxu0 0.0
  %711 = vmatprep.mubr.f32.mxu0 0.0
  %712 = vmatmul.mubr.f32.gmra.mrb[0].mxu0 %v645
  %v713 = vpop.f32.mrb[0].mxu0
  %v714 = vadd.f32 %v537, %v713
  %v715 = vpop.f32.mrb[0].mxu0
  %716 = vdwg.mxu0
  %v717 = vadd.f32 %v496, %v714
  %v718 = vxor.u32 %v717, 2147483648
  %v719 = vmul.f32 %v718, 1.442695
  %v720 = vpow.pop %v719
  %v721 = vadd.f32 %v720, 1.0
  %v722 = vrcp.pop %v721
  %v723 = vmul.f32 1.0, %v722
  %725 = vrot.lane.b32.xlu0 %v714, 64
  %v726 = vpop.permute.xlu0 %725
  %v728 = vmul.f32 %v723, %v726
  %730 = vrot.lane.b32.xlu0 %v728, 64
  %v731 = vpop.permute.xlu0 %730
  %v733 = vadd.f32 %v496, %v731
  %v734 = vtanh.pop %v733
  %v735 = vsub.f32 1.0, %v723
  %737 = vrot.lane.b32.xlu0 %v734, 96
  %v738 = vpop.permute.xlu0 %737
  %v740 = vmul.f32 %v735, %v738
  %v741 = vmul.f32 %v723, %v639
  %v742 = vadd.f32 %v740, %v741
  %744 = vrot.lane.b32.xlu0 %v742, 96
  %v745 = vpop.permute.xlu0 %744
  %747 = vst.msk [vmem:[#allocation2 + $0x8] sm:$0xff] %vm189, %v745
  %v748 = vsel %vm189, %v745, 0
  %750 = vmatprep.subr.mxu0 0.0
  %751 = vmatpush1.msra.mxu0 %v529
  %752 = vmatprep.subr.mxu0 0.0
  %753 = vmatpush1.msra.mxu0 %v530
  %754 = vmatprep.subr.mxu0 0.0
  %755 = vmatpush1.msra.mxu0 %v531
  %756 = vmatprep.subr.mxu0 0.0
  %757 = vmatpush1.msra.mxu0 %v532
  %758 = vmatprep.subr.mxu0 0.0
  %759 = vmatpush1.msra.mxu0 0.0
  %760 = vmatprep.subr.mxu0 0.0
  %761 = vmatpush1.msra.mxu0 0.0
  %762 = vmatprep.subr.mxu0 0.0
  %763 = vmatpush1.msra.mxu0 0.0
  %764 = vmatprep.subr.mxu0 0.0
  %765 = vmatpush1.msra.mxu0 0.0
  %766 = vmatprep.subr.mxu0 0.0
  %767 = vmatpush1.msra.mxu0 0.0
  %768 = vmatprep.subr.mxu0 0.0
  %769 = vmatpush1.msra.mxu0 0.0
  %770 = vmatprep.subr.mxu0 0.0
  %771 = vmatpush1.msra.mxu0 0.0
  %772 = vmatprep.subr.mxu0 0.0
  %773 = vmatpush1.msra.mxu0 0.0
  %774 = vmatprep.subr.mxu0 0.0
  %775 = vmatpush1.msra.mxu0 0.0
  %776 = vmatprep.subr.mxu0 0.0
  %777 = vmatpush1.msra.mxu0 0.0
  %778 = vmatprep.subr.mxu0 0.0
  %779 = vmatpush1.msra.mxu0 0.0
  %780 = vmatprep.subr.mxu0 0.0
  %781 = vmatpush1.msra.mxu0 0.0
  %782 = vmatprep.subr.mxu0 0.0
  %783 = vmatpush1.msra.mxu0 0.0
  %784 = vmatprep.subr.mxu0 0.0
  %785 = vmatpush1.msra.mxu0 0.0
  %786 = vmatprep.subr.mxu0 0.0
  %787 = vmatpush1.msra.mxu0 0.0
  %788 = vmatprep.subr.mxu0 0.0
  %789 = vmatpush1.msra.mxu0 0.0
  %790 = vmatprep.subr.mxu0 0.0
  %791 = vmatpush1.msra.mxu0 0.0
  %792 = vmatprep.subr.mxu0 0.0
  %793 = vmatpush1.msra.mxu0 0.0
  %794 = vmatprep.subr.mxu0 0.0
  %795 = vmatpush1.msra.mxu0 0.0
  %796 = vmatprep.subr.mxu0 0.0
  %797 = vmatpush1.msra.mxu0 0.0
  %798 = vmatprep.subr.mxu0 0.0
  %799 = vmatpush1.msra.mxu0 0.0
  %800 = vmatprep.subr.mxu0 0.0
  %801 = vmatpush1.msra.mxu0 0.0
  %802 = vmatprep.subr.mxu0 0.0
  %803 = vmatpush1.msra.mxu0 0.0
  %804 = vmatprep.subr.mxu0 0.0
  %805 = vmatpush1.msra.mxu0 0.0
  %806 = vmatprep.subr.mxu0 0.0
  %807 = vmatpush1.msra.mxu0 0.0
  %808 = vmatprep.subr.mxu0 0.0
  %809 = vmatpush1.msra.mxu0 0.0
  %810 = vmatprep.subr.mxu0 0.0
  %811 = vmatpush1.msra.mxu0 0.0
  %812 = vmatprep.subr.mxu0 0.0
  %813 = vmatpush1.msra.mxu0 0.0
  %814 = vmatprep.mubr.f32.mxu0 0.0
  %815 = vmatmul.mubr.f32.gmra.mrb[0].mxu0 %v748
  %v816 = vpop.f32.mrb[0].mxu0
  %v817 = vadd.f32 %v537, %v816
  %v818 = vpop.f32.mrb[0].mxu0
  %819 = vdwg.mxu0
  %v820 = vadd.f32 %v501, %v817
  %v821 = vxor.u32 %v820, 2147483648
  %v822 = vmul.f32 %v821, 1.442695
  %v823 = vpow.pop %v822
  %v824 = vadd.f32 %v823, 1.0
  %v825 = vrcp.pop %v824
  %v826 = vmul.f32 1.0, %v825
  %828 = vrot.lane.b32.xlu0 %v817, 64
  %v829 = vpop.permute.xlu0 %828
  %v831 = vmul.f32 %v826, %v829
  %833 = vrot.lane.b32.xlu0 %v831, 64
  %v834 = vpop.permute.xlu0 %833
  %v836 = vadd.f32 %v501, %v834
  %v837 = vtanh.pop %v836
  %v838 = vsub.f32 1.0, %v826
  %840 = vrot.lane.b32.xlu0 %v837, 96
  %v841 = vpop.permute.xlu0 %840
  %v843 = vmul.f32 %v838, %v841
  %v844 = vmul.f32 %v826, %v742
  %v845 = vadd.f32 %v843, %v844
  %847 = vrot.lane.b32.xlu0 %v845, 96
  %v848 = vpop.permute.xlu0 %847
  %850 = vst.msk [vmem:[#allocation2 + $0x10] sm:$0xff] %vm189, %v848
  %v851 = vsel %vm189, %v848, 0
  %853 = vmatprep.subr.mxu0 0.0
  %854 = vmatpush1.msra.mxu0 %v529
  %855 = vmatprep.subr.mxu0 0.0
  %856 = vmatpush1.msra.mxu0 %v530
  %857 = vmatprep.subr.mxu0 0.0
  %858 = vmatpush1.msra.mxu0 %v531
  %859 = vmatprep.subr.mxu0 0.0
  %860 = vmatpush1.msra.mxu0 %v532
  %861 = vmatprep.subr.mxu0 0.0
  %862 = vmatpush1.msra.mxu0 0.0
  %863 = vmatprep.subr.mxu0 0.0
  %864 = vmatpush1.msra.mxu0 0.0
  %865 = vmatprep.subr.mxu0 0.0
  %866 = vmatpush1.msra.mxu0 0.0
  %867 = vmatprep.subr.mxu0 0.0
  %868 = vmatpush1.msra.mxu0 0.0
  %869 = vmatprep.subr.mxu0 0.0
  %870 = vmatpush1.msra.mxu0 0.0
  %871 = vmatprep.subr.mxu0 0.0
  %872 = vmatpush1.msra.mxu0 0.0
  %873 = vmatprep.subr.mxu0 0.0
  %874 = vmatpush1.msra.mxu0 0.0
  %875 = vmatprep.subr.mxu0 0.0
  %876 = vmatpush1.msra.mxu0 0.0
  %877 = vmatprep.subr.mxu0 0.0
  %878 = vmatpush1.msra.mxu0 0.0
  %879 = vmatprep.subr.mxu0 0.0
  %880 = vmatpush1.msra.mxu0 0.0
  %881 = vmatprep.subr.mxu0 0.0
  %882 = vmatpush1.msra.mxu0 0.0
  %883 = vmatprep.subr.mxu0 0.0
  %884 = vmatpush1.msra.mxu0 0.0
  %885 = vmatprep.subr.mxu0 0.0
  %886 = vmatpush1.msra.mxu0 0.0
  %887 = vmatprep.subr.mxu0 0.0
  %888 = vmatpush1.msra.mxu0 0.0
  %889 = vmatprep.subr.mxu0 0.0
  %890 = vmatpush1.msra.mxu0 0.0
  %891 = vmatprep.subr.mxu0 0.0
  %892 = vmatpush1.msra.mxu0 0.0
  %893 = vmatprep.subr.mxu0 0.0
  %894 = vmatpush1.msra.mxu0 0.0
  %895 = vmatprep.subr.mxu0 0.0
  %896 = vmatpush1.msra.mxu0 0.0
  %897 = vmatprep.subr.mxu0 0.0
  %898 = vmatpush1.msra.mxu0 0.0
  %899 = vmatprep.subr.mxu0 0.0
  %900 = vmatpush1.msra.mxu0 0.0
  %901 = vmatprep.subr.mxu0 0.0
  %902 = vmatpush1.msra.mxu0 0.0
  %903 = vmatprep.subr.mxu0 0.0
  %904 = vmatpush1.msra.mxu0 0.0
  %905 = vmatprep.subr.mxu0 0.0
  %906 = vmatpush1.msra.mxu0 0.0
  %907 = vmatprep.subr.mxu0 0.0
  %908 = vmatpush1.msra.mxu0 0.0
  %909 = vmatprep.subr.mxu0 0.0
  %910 = vmatpush1.msra.mxu0 0.0
  %911 = vmatprep.subr.mxu0 0.0
  %912 = vmatpush1.msra.mxu0 0.0
  %913 = vmatprep.subr.mxu0 0.0
  %914 = vmatpush1.msra.mxu0 0.0
  %915 = vmatprep.subr.mxu0 0.0
  %916 = vmatpush1.msra.mxu0 0.0
  %917 = vmatprep.mubr.f32.mxu0 0.0
  %918 = vmatmul.mubr.f32.gmra.mrb[0].mxu0 %v851
  %v919 = vpop.f32.mrb[0].mxu0
  %v920 = vadd.f32 %v537, %v919
  %v921 = vpop.f32.mrb[0].mxu0
  %922 = vdwg.mxu0
  %v923 = vadd.f32 %v506, %v920
  %v924 = vxor.u32 %v923, 2147483648
  %v925 = vmul.f32 %v924, 1.442695
  %v926 = vpow.pop %v925
  %v927 = vadd.f32 %v926, 1.0
  %v928 = vrcp.pop %v927
  %v929 = vmul.f32 1.0, %v928
  %931 = vrot.lane.b32.xlu0 %v920, 64
  %v932 = vpop.permute.xlu0 %931
  %v934 = vmul.f32 %v929, %v932
  %936 = vrot.lane.b32.xlu0 %v934, 64
  %v937 = vpop.permute.xlu0 %936
  %v939 = vadd.f32 %v506, %v937
  %v940 = vtanh.pop %v939
  %v941 = vsub.f32 1.0, %v929
  %943 = vrot.lane.b32.xlu0 %v940, 96
  %v944 = vpop.permute.xlu0 %943
  %v946 = vmul.f32 %v941, %v944
  %v947 = vmul.f32 %v929, %v845
  %v948 = vadd.f32 %v946, %v947
  %950 = vrot.lane.b32.xlu0 %v948, 96
  %v951 = vpop.permute.xlu0 %950
  %953 = vst.msk [vmem:[#allocation2 + $0x18] sm:$0xff] %vm189, %v951
  %v954 = vsel %vm189, %v951, 0
  %956 = vmatprep.subr.mxu0 0.0
  %957 = vmatpush1.msra.mxu0 %v529
  %958 = vmatprep.subr.mxu0 0.0
  %959 = vmatpush1.msra.mxu0 %v530
  %960 = vmatprep.subr.mxu0 0.0
  %961 = vmatpush1.msra.mxu0 %v531
  %962 = vmatprep.subr.mxu0 0.0
  %963 = vmatpush1.msra.mxu0 %v532
  %964 = vmatprep.subr.mxu0 0.0
  %965 = vmatpush1.msra.mxu0 0.0
  %966 = vmatprep.subr.mxu0 0.0
  %967 = vmatpush1.msra.mxu0 0.0
  %968 = vmatprep.subr.mxu0 0.0
  %969 = vmatpush1.msra.mxu0 0.0
  %970 = vmatprep.subr.mxu0 0.0
  %971 = vmatpush1.msra.mxu0 0.0
  %972 = vmatprep.subr.mxu0 0.0
  %973 = vmatpush1.msra.mxu0 0.0
  %974 = vmatprep.subr.mxu0 0.0
  %975 = vmatpush1.msra.mxu0 0.0
  %976 = vmatprep.subr.mxu0 0.0
  %977 = vmatpush1.msra.mxu0 0.0
  %978 = vmatprep.subr.mxu0 0.0
  %979 = vmatpush1.msra.mxu0 0.0
  %980 = vmatprep.subr.mxu0 0.0
  %981 = vmatpush1.msra.mxu0 0.0
  %982 = vmatprep.subr.mxu0 0.0
  %983 = vmatpush1.msra.mxu0 0.0
  %984 = vmatprep.subr.mxu0 0.0
  %985 = vmatpush1.msra.mxu0 0.0
  %986 = vmatprep.subr.mxu0 0.0
  %987 = vmatpush1.msra.mxu0 0.0
  %988 = vmatprep.subr.mxu0 0.0
  %989 = vmatpush1.msra.mxu0 0.0
  %990 = vmatprep.subr.mxu0 0.0
  %991 = vmatpush1.msra.mxu0 0.0
  %992 = vmatprep.subr.mxu0 0.0
  %993 = vmatpush1.msra.mxu0 0.0
  %994 = vmatprep.subr.mxu0 0.0
  %995 = vmatpush1.msra.mxu0 0.0
  %996 = vmatprep.subr.mxu0 0.0
  %997 = vmatpush1.msra.mxu0 0.0
  %998 = vmatprep.subr.mxu0 0.0
  %999 = vmatpush1.msra.mxu0 0.0
  %1000 = vmatprep.subr.mxu0 0.0
  %1001 = vmatpush1.msra.mxu0 0.0
  %1002 = vmatprep.subr.mxu0 0.0
  %1003 = vmatpush1.msra.mxu0 0.0
  %1004 = vmatprep.subr.mxu0 0.0
  %1005 = vmatpush1.msra.mxu0 0.0
  %1006 = vmatprep.subr.mxu0 0.0
  %1007 = vmatpush1.msra.mxu0 0.0
  %1008 = vmatprep.subr.mxu0 0.0
  %1009 = vmatpush1.msra.mxu0 0.0
  %1010 = vmatprep.subr.mxu0 0.0
  %1011 = vmatpush1.msra.mxu0 0.0
  %1012 = vmatprep.subr.mxu0 0.0
  %1013 = vmatpush1.msra.mxu0 0.0
  %1014 = vmatprep.subr.mxu0 0.0
  %1015 = vmatpush1.msra.mxu0 0.0
  %1016 = vmatprep.subr.mxu0 0.0
  %1017 = vmatpush1.msra.mxu0 0.0
  %1018 = vmatprep.subr.mxu0 0.0
  %1019 = vmatpush1.msra.mxu0 0.0
  %1020 = vmatprep.mubr.f32.mxu0 0.0
  %1021 = vmatmul.mubr.f32.gmra.mrb[0].mxu0 %v954
  %v1022 = vpop.f32.mrb[0].mxu0
  %v1023 = vadd.f32 %v537, %v1022
  %v1024 = vpop.f32.mrb[0].mxu0
  %1025 = vdwg.mxu0
  %v1026 = vadd.f32 %v511, %v1023
  %v1027 = vxor.u32 %v1026, 2147483648
  %v1028 = vmul.f32 %v1027, 1.442695
  %v1029 = vpow.pop %v1028
  %v1030 = vadd.f32 %v1029, 1.0
  %v1031 = vrcp.pop %v1030
  %v1032 = vmul.f32 1.0, %v1031
  %1034 = vrot.lane.b32.xlu0 %v1023, 64
  %v1035 = vpop.permute.xlu0 %1034
  %v1037 = vmul.f32 %v1032, %v1035
  %1039 = vrot.lane.b32.xlu0 %v1037, 64
  %v1040 = vpop.permute.xlu0 %1039
  %v1042 = vadd.f32 %v511, %v1040
  %v1043 = vtanh.pop %v1042
  %v1044 = vsub.f32 1.0, %v1032
  %1046 = vrot.lane.b32.xlu0 %v1043, 96
  %v1047 = vpop.permute.xlu0 %1046
  %v1049 = vmul.f32 %v1044, %v1047
  %v1050 = vmul.f32 %v1032, %v948
  %v1051 = vadd.f32 %v1049, %v1050
  %1053 = vrot.lane.b32.xlu0 %v1051, 96
  %v1054 = vpop.permute.xlu0 %1053
  %1056 = vst.msk [vmem:[#allocation2 + $0x20] sm:$0xff] %vm189, %v1054
  %v1057 = vsel %vm189, %v1054, 0
  %1059 = vmatprep.subr.mxu0 0.0
  %1060 = vmatpush1.msra.mxu0 %v529
  %1061 = vmatprep.subr.mxu0 0.0
  %1062 = vmatpush1.msra.mxu0 %v530
  %1063 = vmatprep.subr.mxu0 0.0
  %1064 = vmatpush1.msra.mxu0 %v531
  %1065 = vmatprep.subr.mxu0 0.0
  %1066 = vmatpush1.msra.mxu0 %v532
  %1067 = vmatprep.subr.mxu0 0.0
  %1068 = vmatpush1.msra.mxu0 0.0
  %1069 = vmatprep.subr.mxu0 0.0
  %1070 = vmatpush1.msra.mxu0 0.0
  %1071 = vmatprep.subr.mxu0 0.0
  %1072 = vmatpush1.msra.mxu0 0.0
  %1073 = vmatprep.subr.mxu0 0.0
  %1074 = vmatpush1.msra.mxu0 0.0
  %1075 = vmatprep.subr.mxu0 0.0
  %1076 = vmatpush1.msra.mxu0 0.0
  %1077 = vmatprep.subr.mxu0 0.0
  %1078 = vmatpush1.msra.mxu0 0.0
  %1079 = vmatprep.subr.mxu0 0.0
  %1080 = vmatpush1.msra.mxu0 0.0
  %1081 = vmatprep.subr.mxu0 0.0
  %1082 = vmatpush1.msra.mxu0 0.0
  %1083 = vmatprep.subr.mxu0 0.0
  %1084 = vmatpush1.msra.mxu0 0.0
  %1085 = vmatprep.subr.mxu0 0.0
  %1086 = vmatpush1.msra.mxu0 0.0
  %1087 = vmatprep.subr.mxu0 0.0
  %1088 = vmatpush1.msra.mxu0 0.0
  %1089 = vmatprep.subr.mxu0 0.0
  %1090 = vmatpush1.msra.mxu0 0.0
  %1091 = vmatprep.subr.mxu0 0.0
  %1092 = vmatpush1.msra.mxu0 0.0
  %1093 = vmatprep.subr.mxu0 0.0
  %1094 = vmatpush1.msra.mxu0 0.0
  %1095 = vmatprep.subr.mxu0 0.0
  %1096 = vmatpush1.msra.mxu0 0.0
  %1097 = vmatprep.subr.mxu0 0.0
  %1098 = vmatpush1.msra.mxu0 0.0
  %1099 = vmatprep.subr.mxu0 0.0
  %1100 = vmatpush1.msra.mxu0 0.0
  %1101 = vmatprep.subr.mxu0 0.0
  %1102 = vmatpush1.msra.mxu0 0.0
  %1103 = vmatprep.subr.mxu0 0.0
  %1104 = vmatpush1.msra.mxu0 0.0
  %1105 = vmatprep.subr.mxu0 0.0
  %1106 = vmatpush1.msra.mxu0 0.0
  %1107 = vmatprep.subr.mxu0 0.0
  %1108 = vmatpush1.msra.mxu0 0.0
  %1109 = vmatprep.subr.mxu0 0.0
  %1110 = vmatpush1.msra.mxu0 0.0
  %1111 = vmatprep.subr.mxu0 0.0
  %1112 = vmatpush1.msra.mxu0 0.0
  %1113 = vmatprep.subr.mxu0 0.0
  %1114 = vmatpush1.msra.mxu0 0.0
  %1115 = vmatprep.subr.mxu0 0.0
  %1116 = vmatpush1.msra.mxu0 0.0
  %1117 = vmatprep.subr.mxu0 0.0
  %1118 = vmatpush1.msra.mxu0 0.0
  %1119 = vmatprep.subr.mxu0 0.0
  %1120 = vmatpush1.msra.mxu0 0.0
  %1121 = vmatprep.subr.mxu0 0.0
  %1122 = vmatpush1.msra.mxu0 0.0
  %1123 = vmatprep.mubr.f32.mxu0 0.0
  %1124 = vmatmul.mubr.f32.gmra.mrb[0].mxu0 %v1057
  %v1125 = vpop.f32.mrb[0].mxu0
  %v1126 = vadd.f32 %v537, %v1125
  %v1127 = vpop.f32.mrb[0].mxu0
  %1128 = vdwg.mxu0
  %v1129 = vadd.f32 %v516, %v1126
  %v1130 = vxor.u32 %v1129, 2147483648
  %v1131 = vmul.f32 %v1130, 1.442695
  %v1132 = vpow.pop %v1131
  %v1133 = vadd.f32 %v1132, 1.0
  %v1134 = vrcp.pop %v1133
  %v1135 = vmul.f32 1.0, %v1134
  %1137 = vrot.lane.b32.xlu0 %v1126, 64
  %v1138 = vpop.permute.xlu0 %1137
  %v1140 = vmul.f32 %v1135, %v1138
  %1142 = vrot.lane.b32.xlu0 %v1140, 64
  %v1143 = vpop.permute.xlu0 %1142
  %v1145 = vadd.f32 %v516, %v1143
  %v1146 = vtanh.pop %v1145
  %v1147 = vsub.f32 1.0, %v1135
  %1149 = vrot.lane.b32.xlu0 %v1146, 96
  %v1150 = vpop.permute.xlu0 %1149
  %v1152 = vmul.f32 %v1147, %v1150
  %v1153 = vmul.f32 %v1135, %v1051
  %v1154 = vadd.f32 %v1152, %v1153
  %1156 = vrot.lane.b32.xlu0 %v1154, 96
  %v1157 = vpop.permute.xlu0 %1156
  %1159 = vst.msk [vmem:[#allocation2 + $0x28] sm:$0xff] %vm189, %v1157
  %v1160 = vsel %vm189, %v1157, 0
  %1162 = vmatprep.subr.mxu0 0.0
  %1163 = vmatpush1.msra.mxu0 %v529
  %1164 = vmatprep.subr.mxu0 0.0
  %1165 = vmatpush1.msra.mxu0 %v530
  %1166 = vmatprep.subr.mxu0 0.0
  %1167 = vmatpush1.msra.mxu0 %v531
  %1168 = vmatprep.subr.mxu0 0.0
  %1169 = vmatpush1.msra.mxu0 %v532
  %1170 = vmatprep.subr.mxu0 0.0
  %1171 = vmatpush1.msra.mxu0 0.0
  %1172 = vmatprep.subr.mxu0 0.0
  %1173 = vmatpush1.msra.mxu0 0.0
  %1174 = vmatprep.subr.mxu0 0.0
  %1175 = vmatpush1.msra.mxu0 0.0
  %1176 = vmatprep.subr.mxu0 0.0
  %1177 = vmatpush1.msra.mxu0 0.0
  %1178 = vmatprep.subr.mxu0 0.0
  %1179 = vmatpush1.msra.mxu0 0.0
  %1180 = vmatprep.subr.mxu0 0.0
  %1181 = vmatpush1.msra.mxu0 0.0
  %1182 = vmatprep.subr.mxu0 0.0
  %1183 = vmatpush1.msra.mxu0 0.0
  %1184 = vmatprep.subr.mxu0 0.0
  %1185 = vmatpush1.msra.mxu0 0.0
  %1186 = vmatprep.subr.mxu0 0.0
  %1187 = vmatpush1.msra.mxu0 0.0
  %1188 = vmatprep.subr.mxu0 0.0
  %1189 = vmatpush1.msra.mxu0 0.0
  %1190 = vmatprep.subr.mxu0 0.0
  %1191 = vmatpush1.msra.mxu0 0.0
  %1192 = vmatprep.subr.mxu0 0.0
  %1193 = vmatpush1.msra.mxu0 0.0
  %1194 = vmatprep.subr.mxu0 0.0
  %1195 = vmatpush1.msra.mxu0 0.0
  %1196 = vmatprep.subr.mxu0 0.0
  %1197 = vmatpush1.msra.mxu0 0.0
  %1198 = vmatprep.subr.mxu0 0.0
  %1199 = vmatpush1.msra.mxu0 0.0
  %1200 = vmatprep.subr.mxu0 0.0
  %1201 = vmatpush1.msra.mxu0 0.0
  %1202 = vmatprep.subr.mxu0 0.0
  %1203 = vmatpush1.msra.mxu0 0.0
  %1204 = vmatprep.subr.mxu0 0.0
  %1205 = vmatpush1.msra.mxu0 0.0
  %1206 = vmatprep.subr.mxu0 0.0
  %1207 = vmatpush1.msra.mxu0 0.0
  %1208 = vmatprep.subr.mxu0 0.0
  %1209 = vmatpush1.msra.mxu0 0.0
  %1210 = vmatprep.subr.mxu0 0.0
  %1211 = vmatpush1.msra.mxu0 0.0
  %1212 = vmatprep.subr.mxu0 0.0
  %1213 = vmatpush1.msra.mxu0 0.0
  %1214 = vmatprep.subr.mxu0 0.0
  %1215 = vmatpush1.msra.mxu0 0.0
  %1216 = vmatprep.subr.mxu0 0.0
  %1217 = vmatpush1.msra.mxu0 0.0
  %1218 = vmatprep.subr.mxu0 0.0
  %1219 = vmatpush1.msra.mxu0 0.0
  %1220 = vmatprep.subr.mxu0 0.0
  %1221 = vmatpush1.msra.mxu0 0.0
  %1222 = vmatprep.subr.mxu0 0.0
  %1223 = vmatpush1.msra.mxu0 0.0
  %1224 = vmatprep.subr.mxu0 0.0
  %1225 = vmatpush1.msra.mxu0 0.0
  %1226 = vmatprep.mubr.f32.mxu0 0.0
  %1227 = vmatmul.mubr.f32.gmra.mrb[0].mxu0 %v1160
  %v1228 = vpop.f32.mrb[0].mxu0
  %v1229 = vadd.f32 %v537, %v1228
  %v1230 = vpop.f32.mrb[0].mxu0
  %1231 = vdwg.mxu0
  %v1232 = vadd.f32 %v521, %v1229
  %v1233 = vxor.u32 %v1232, 2147483648
  %v1234 = vmul.f32 %v1233, 1.442695
  %v1235 = vpow.pop %v1234
  %v1236 = vadd.f32 %v1235, 1.0
  %v1237 = vrcp.pop %v1236
  %v1238 = vmul.f32 1.0, %v1237
  %1240 = vrot.lane.b32.xlu0 %v1229, 64
  %v1241 = vpop.permute.xlu0 %1240
  %v1243 = vmul.f32 %v1238, %v1241
  %1245 = vrot.lane.b32.xlu0 %v1243, 64
  %v1246 = vpop.permute.xlu0 %1245
  %v1248 = vadd.f32 %v521, %v1246
  %v1249 = vtanh.pop %v1248
  %v1250 = vsub.f32 1.0, %v1238
  %1252 = vrot.lane.b32.xlu0 %v1249, 96
  %v1253 = vpop.permute.xlu0 %1252
  %v1255 = vmul.f32 %v1250, %v1253
  %v1256 = vmul.f32 %v1238, %v1154
  %v1257 = vadd.f32 %v1255, %v1256
  %1259 = vrot.lane.b32.xlu0 %v1257, 96
  %v1260 = vpop.permute.xlu0 %1259
  %1262 = vst.msk [vmem:[#allocation2 + $0x30] sm:$0xff] %vm189, %v1260
  %v1263 = vsel %vm189, %v1260, 0
  %1265 = vmatprep.subr.mxu0 0.0
  %1266 = vmatpush1.msra.mxu0 %v529
  %1267 = vmatprep.subr.mxu0 0.0
  %1268 = vmatpush1.msra.mxu0 %v530
  %1269 = vmatprep.subr.mxu0 0.0
  %1270 = vmatpush1.msra.mxu0 %v531
  %1271 = vmatprep.subr.mxu0 0.0
  %1272 = vmatpush1.msra.mxu0 %v532
  %1273 = vmatprep.subr.mxu0 0.0
  %1274 = vmatpush1.msra.mxu0 0.0
  %1275 = vmatprep.subr.mxu0 0.0
  %1276 = vmatpush1.msra.mxu0 0.0
  %1277 = vmatprep.subr.mxu0 0.0
  %1278 = vmatpush1.msra.mxu0 0.0
  %1279 = vmatprep.subr.mxu0 0.0
  %1280 = vmatpush1.msra.mxu0 0.0
  %1281 = vmatprep.subr.mxu0 0.0
  %1282 = vmatpush1.msra.mxu0 0.0
  %1283 = vmatprep.subr.mxu0 0.0
  %1284 = vmatpush1.msra.mxu0 0.0
  %1285 = vmatprep.subr.mxu0 0.0
  %1286 = vmatpush1.msra.mxu0 0.0
  %1287 = vmatprep.subr.mxu0 0.0
  %1288 = vmatpush1.msra.mxu0 0.0
  %1289 = vmatprep.subr.mxu0 0.0
  %1290 = vmatpush1.msra.mxu0 0.0
  %1291 = vmatprep.subr.mxu0 0.0
  %1292 = vmatpush1.msra.mxu0 0.0
  %1293 = vmatprep.subr.mxu0 0.0
  %1294 = vmatpush1.msra.mxu0 0.0
  %1295 = vmatprep.subr.mxu0 0.0
  %1296 = vmatpush1.msra.mxu0 0.0
  %1297 = vmatprep.subr.mxu0 0.0
  %1298 = vmatpush1.msra.mxu0 0.0
  %1299 = vmatprep.subr.mxu0 0.0
  %1300 = vmatpush1.msra.mxu0 0.0
  %1301 = vmatprep.subr.mxu0 0.0
  %1302 = vmatpush1.msra.mxu0 0.0
  %1303 = vmatprep.subr.mxu0 0.0
  %1304 = vmatpush1.msra.mxu0 0.0
  %1305 = vmatprep.subr.mxu0 0.0
  %1306 = vmatpush1.msra.mxu0 0.0
  %1307 = vmatprep.subr.mxu0 0.0
  %1308 = vmatpush1.msra.mxu0 0.0
  %1309 = vmatprep.subr.mxu0 0.0
  %1310 = vmatpush1.msra.mxu0 0.0
  %1311 = vmatprep.subr.mxu0 0.0
  %1312 = vmatpush1.msra.mxu0 0.0
  %1313 = vmatprep.subr.mxu0 0.0
  %1314 = vmatpush1.msra.mxu0 0.0
  %1315 = vmatprep.subr.mxu0 0.0
  %1316 = vmatpush1.msra.mxu0 0.0
  %1317 = vmatprep.subr.mxu0 0.0
  %1318 = vmatpush1.msra.mxu0 0.0
  %1319 = vmatprep.subr.mxu0 0.0
  %1320 = vmatpush1.msra.mxu0 0.0
  %1321 = vmatprep.subr.mxu0 0.0
  %1322 = vmatpush1.msra.mxu0 0.0
  %1323 = vmatprep.subr.mxu0 0.0
  %1324 = vmatpush1.msra.mxu0 0.0
  %1325 = vmatprep.subr.mxu0 0.0
  %1326 = vmatpush1.msra.mxu0 0.0
  %1327 = vmatprep.subr.mxu0 0.0
  %1328 = vmatpush1.msra.mxu0 0.0
  %1329 = vmatprep.mubr.f32.mxu0 0.0
  %1330 = vmatmul.mubr.f32.gmra.mrb[0].mxu0 %v1263
  %v1331 = vpop.f32.mrb[0].mxu0
  %v1332 = vadd.f32 %v537, %v1331
  %v1333 = vpop.f32.mrb[0].mxu0
  %1334 = vdwg.mxu0
  %v1335 = vadd.f32 %v526, %v1332
  %v1336 = vxor.u32 %v1335, 2147483648
  %v1337 = vmul.f32 %v1336, 1.442695
  %v1338 = vpow.pop %v1337
  %v1339 = vadd.f32 %v1338, 1.0
  %v1340 = vrcp.pop %v1339
  %v1341 = vmul.f32 1.0, %v1340
  %1343 = vrot.lane.b32.xlu0 %v1332, 64
  %v1344 = vpop.permute.xlu0 %1343
  %v1346 = vmul.f32 %v1341, %v1344
  %1348 = vrot.lane.b32.xlu0 %v1346, 64
  %v1349 = vpop.permute.xlu0 %1348
  %v1351 = vadd.f32 %v526, %v1349
  %v1352 = vtanh.pop %v1351
  %v1353 = vsub.f32 1.0, %v1341
  %1355 = vrot.lane.b32.xlu0 %v1352, 96
  %v1356 = vpop.permute.xlu0 %1355
  %v1358 = vmul.f32 %v1353, %v1356
  %v1359 = vmul.f32 %v1341, %v1257
  %v1360 = vadd.f32 %v1358, %v1359
  %1362 = vrot.lane.b32.xlu0 %v1360, 96
  %v1363 = vpop.permute.xlu0 %1362
  %1365 = vst.msk [vmem:[#allocation2 + $0x38] sm:$0xff] %vm189, %v1363
  %v1366 = vld [vmem:[#allocation2] sm:$0xff]
  %v1367 = vld [vmem:[#allocation2 + $0x8] sm:$0xff]
  %v1368 = vld [vmem:[#allocation2 + $0x10] sm:$0xff]
  %v1369 = vld [vmem:[#allocation2 + $0x18] sm:$0xff]
  %v1370 = vld [vmem:[#allocation2 + $0x20] sm:$0xff]
  %v1371 = vld [vmem:[#allocation2 + $0x28] sm:$0xff]
  %v1372 = vld [vmem:[#allocation2 + $0x30] sm:$0xff]
  %v1373 = vld [vmem:[#allocation2 + $0x38] sm:$0xff]
  %v1374 = vld [vmem:[%s7] sm:$0xff]
  %v1375 = vld [vmem:[%s7 + $0x8] sm:$0xff]
  %v1376 = vld [vmem:[%s7 + $0x10] sm:$0xff]
  %v1377 = vld [vmem:[%s7 + $0x18] sm:$0xff]
  %v1378 = vlaneseq
  %v1379 = vshrl.u32 %v1378, 7
  %v1380 = vsub.s32 3, %v1379
  %v1381 = vrot.slane %v32, %v1380
  %v1383 = vsel %vm189, %v1366, 0
  %v1386 = vsel %vm189, %v1367, 0
  %v1389 = vsel %vm189, %v1368, 0
  %v1392 = vsel %vm189, %v1369, 0
  %v1395 = vsel %vm189, %v1370, 0
  %v1398 = vsel %vm189, %v1371, 0
  %v1401 = vsel %vm189, %v1372, 0
  %v1404 = vsel %vm189, %v1373, 0
  %1406 = vmatprep.subr.mxu0 0.0
  %1407 = vmatpush1.msra.mxu0 %v1374
  %1408 = vmatprep.subr.mxu0 0.0
  %1409 = vmatpush1.msra.mxu0 %v1375
  %1410 = vmatprep.subr.mxu0 0.0
  %1411 = vmatpush1.msra.mxu0 %v1376
  %1412 = vmatprep.subr.mxu0 0.0
  %1413 = vmatpush1.msra.mxu0 %v1377
  %1414 = vmatprep.subr.mxu0 0.0
  %1415 = vmatpush1.msra.mxu0 0.0
  %1416 = vmatprep.subr.mxu0 0.0
  %1417 = vmatpush1.msra.mxu0 0.0
  %1418 = vmatprep.subr.mxu0 0.0
  %1419 = vmatpush1.msra.mxu0 0.0
  %1420 = vmatprep.subr.mxu0 0.0
  %1421 = vmatpush1.msra.mxu0 0.0
  %1422 = vmatprep.subr.mxu0 0.0
  %1423 = vmatpush1.msra.mxu0 0.0
  %1424 = vmatprep.subr.mxu0 0.0
  %1425 = vmatpush1.msra.mxu0 0.0
  %1426 = vmatprep.subr.mxu0 0.0
  %1427 = vmatpush1.msra.mxu0 0.0
  %1428 = vmatprep.subr.mxu0 0.0
  %1429 = vmatpush1.msra.mxu0 0.0
  %1430 = vmatprep.subr.mxu0 0.0
  %1431 = vmatpush1.msra.mxu0 0.0
  %1432 = vmatprep.subr.mxu0 0.0
  %1433 = vmatpush1.msra.mxu0 0.0
  %1434 = vmatprep.subr.mxu0 0.0
  %1435 = vmatpush1.msra.mxu0 0.0
  %1436 = vmatprep.subr.mxu0 0.0
  %1437 = vmatpush1.msra.mxu0 0.0
  %1438 = vmatprep.subr.mxu0 0.0
  %1439 = vmatpush1.msra.mxu0 0.0
  %1440 = vmatprep.subr.mxu0 0.0
  %1441 = vmatpush1.msra.mxu0 0.0
  %1442 = vmatprep.subr.mxu0 0.0
  %1443 = vmatpush1.msra.mxu0 0.0
  %1444 = vmatprep.subr.mxu0 0.0
  %1445 = vmatpush1.msra.mxu0 0.0
  %1446 = vmatprep.subr.mxu0 0.0
  %1447 = vmatpush1.msra.mxu0 0.0
  %1448 = vmatprep.subr.mxu0 0.0
  %1449 = vmatpush1.msra.mxu0 0.0
  %1450 = vmatprep.subr.mxu0 0.0
  %1451 = vmatpush1.msra.mxu0 0.0
  %1452 = vmatprep.subr.mxu0 0.0
  %1453 = vmatpush1.msra.mxu0 0.0
  %1454 = vmatprep.subr.mxu0 0.0
  %1455 = vmatpush1.msra.mxu0 0.0
  %1456 = vmatprep.subr.mxu0 0.0
  %1457 = vmatpush1.msra.mxu0 0.0
  %1458 = vmatprep.subr.mxu0 0.0
  %1459 = vmatpush1.msra.mxu0 0.0
  %1460 = vmatprep.subr.mxu0 0.0
  %1461 = vmatpush1.msra.mxu0 0.0
  %1462 = vmatprep.subr.mxu0 0.0
  %1463 = vmatpush1.msra.mxu0 0.0
  %1464 = vmatprep.subr.mxu0 0.0
  %1465 = vmatpush1.msra.mxu0 0.0
  %1466 = vmatprep.subr.mxu0 0.0
  %1467 = vmatpush1.msra.mxu0 0.0
  %1468 = vmatprep.subr.mxu0 0.0
  %1469 = vmatpush1.msra.mxu0 0.0
  %1470 = vmatprep.mubr.f32.mxu0 0.0
  %1471 = vmatmul.mubr.f32.gmra.mrb[0].mxu0 %v1383
  %v1472 = vpop.f32.mrb[0].mxu0
  %v1473 = vadd.f32 %v1381, %v1472
  %v1474 = vpop.f32.mrb[0].mxu0
  %1475 = vmatprep.mubr.f32.mxu0 0.0
  %1476 = vmatmul.mubr.f32.gmra.mrb[0].mxu0 %v1386
  %v1477 = vpop.f32.mrb[0].mxu0
  %v1478 = vadd.f32 %v1381, %v1477
  %v1479 = vpop.f32.mrb[0].mxu0
  %1480 = vmatprep.mubr.f32.mxu0 0.0
  %1481 = vmatmul.mubr.f32.gmra.mrb[0].mxu0 %v1389
  %v1482 = vpop.f32.mrb[0].mxu0
  %v1483 = vadd.f32 %v1381, %v1482
  %v1484 = vpop.f32.mrb[0].mxu0
  %1485 = vmatprep.mubr.f32.mxu0 0.0
  %1486 = vmatmul.mubr.f32.gmra.mrb[0].mxu0 %v1392
  %v1487 = vpop.f32.mrb[0].mxu0
  %v1488 = vadd.f32 %v1381, %v1487
  %v1489 = vpop.f32.mrb[0].mxu0
  %1490 = vmatprep.mubr.f32.mxu0 0.0
  %1491 = vmatmul.mubr.f32.gmra.mrb[0].mxu0 %v1395
  %v1492 = vpop.f32.mrb[0].mxu0
  %v1493 = vadd.f32 %v1381, %v1492
  %v1494 = vpop.f32.mrb[0].mxu0
  %1495 = vmatprep.mubr.f32.mxu0 0.0
  %1496 = vmatmul.mubr.f32.gmra.mrb[0].mxu0 %v1398
  %v1497 = vpop.f32.mrb[0].mxu0
  %v1498 = vadd.f32 %v1381, %v1497
  %v1499 = vpop.f32.mrb[0].mxu0
  %1500 = vmatprep.mubr.f32.mxu0 0.0
  %1501 = vmatmul.mubr.f32.gmra.mrb[0].mxu0 %v1401
  %v1502 = vpop.f32.mrb[0].mxu0
  %v1503 = vadd.f32 %v1381, %v1502
  %v1504 = vpop.f32.mrb[0].mxu0
  %1505 = vmatprep.mubr.f32.mxu0 0.0
  %1506 = vmatmul.mubr.f32.gmra.mrb[0].mxu0 %v1404
  %v1507 = vpop.f32.mrb[0].mxu0
  %v1508 = vadd.f32 %v1381, %v1507
  %v1509 = vpop.f32.mrb[0].mxu0
  %1510 = vdwg.mxu0
  %v1511 = vtanh.pop %v1473
  %v1512 = vtanh.pop %v1478
  %v1513 = vtanh.pop %v1483
  %v1514 = vtanh.pop %v1488
  %v1515 = vtanh.pop %v1493
  %v1516 = vtanh.pop %v1498
  %v1517 = vtanh.pop %v1503
  %v1518 = vtanh.pop %v1508
  %1519 = vst.msk [vmem:[%s9] sm:$0xff] %vm50, %v1511
  %1520 = vst.msk [vmem:[%s9 + $0x8] sm:$0xff] %vm50, %v1512
  %1521 = vst.msk [vmem:[%s9 + $0x10] sm:$0xff] %vm50, %v1513
  %1522 = vst.msk [vmem:[%s9 + $0x18] sm:$0xff] %vm50, %v1514
  %1523 = vst.msk [vmem:[%s9 + $0x20] sm:$0xff] %vm50, %v1515
  %1524 = vst.msk [vmem:[%s9 + $0x28] sm:$0xff] %vm50, %v1516
  %1525 = vst.msk [vmem:[%s9 + $0x30] sm:$0xff] %vm50, %v1517
  %1526 = vst.msk [vmem:[%s9 + $0x38] sm:$0xff] %vm50, %v1518
  // Predicated region
  $region38: #{tpu_custom_call.1} parent=0 // pred_check
    _
  $region39: #{tpu_custom_call.1} parent=0 // pred_check_branch
    %1528 = sbr.rel (0) target = $region41
  $region40: #{tpu_custom_call.1} parent=0 // pred_region
    _
  $region41: #{tpu_custom_call.1} parent=0 // pred_fallthru
    _
  // Predicated region
  $region42: #{tpu_custom_call.1} parent=0 // pred_check
    _
  $region43: #{tpu_custom_call.1} parent=0 // pred_check_branch
    %1530 = sbr.rel (0) target = $region45
  $region44: #{tpu_custom_call.1} parent=0 // pred_region
    _
  $region45: #{tpu_custom_call.1} parent=0 // pred_fallthru
    _

</llo_original>
